<compile_context>
chip_gen: v5e
topology: v5e:2x2
jax: 0.10.0
libtpu: 0.0.40
codegen_flags: <defaults>
</compile_context>

<pallas_src>
import functools
import math

import jax
import jax.numpy as jnp
from jax.experimental import pallas as pl
from jax.experimental.pallas import tpu as pltpu


def _pick_seq_tile(seq_len):
    """Largest lane-dense tile (multiple of 128) that divides seq_len with >=2 steps."""
    for cand in (512, 256, 128):
        if seq_len % cand == 0 and seq_len // cand >= 2:
            return cand
    return seq_len  # small / awkward seq length: one full-width tile


def _scores_kernel(num_heads, head_dim, scale,
                   x_ref, wq_ref, bq_ref, wk_ref, bk_ref, attn_ref, s_acc):
    """Grid (B, nL): accumulate per-head Q.K^T over seq tiles; softmax at the last tile."""
    l = pl.program_id(1)
    n_l = pl.num_programs(1)

    @pl.when(l == 0)
    def _init():
        s_acc[...] = jnp.zeros_like(s_acc)

    x = x_ref[0]                                                            # (C, tL)
    q = jnp.dot(wq_ref[...], x, preferred_element_type=jnp.float32) + bq_ref[...]
    k = jnp.dot(wk_ref[...], x, preferred_element_type=jnp.float32) + bk_ref[...]

    for h in range(num_heads):
        rows = slice(h * head_dim, (h + 1) * head_dim)
        # S_h += Q_h @ K_h^T   (contract over the seq/lane axis of this tile)
        s_acc[h] += jax.lax.dot_general(
            q[rows, :], k[rows, :],
            dimension_numbers=(((1,), (1,)), ((), ())),
            preferred_element_type=jnp.float32)

    @pl.when(l == n_l - 1)
    def _finalize():
        for h in range(num_heads):
            s = s_acc[h] * scale
            s = s - jnp.max(s, axis=-1, keepdims=True)
            e = jnp.exp(s)
            attn_ref[0, h] = e / jnp.sum(e, axis=-1, keepdims=True)


def _context_kernel(num_heads, head_dim,
                    x_ref, attn_ref, wv_ref, bv_ref, wo_ref, bo_ref,
                    o_ref, weff_ref, beff_ref):
    """Grid (B, nL): fold Wo.blockdiag(A).Wv once per image, then stream x tiles."""
    l = pl.program_id(1)

    @pl.when(l == 0)
    def _fold():
        wo = wo_ref[...]                                                    # (C, C)
        wv = wv_ref[...]                                                    # (C, C)
        bv = bv_ref[...]                                                    # (C, 1)
        c = wo.shape[0]
        weff = jnp.zeros((c, c), jnp.float32)
        beff = jnp.zeros((c, 1), jnp.float32)
        for h in range(num_heads):
            rows = slice(h * head_dim, (h + 1) * head_dim)
            a_h = attn_ref[0, h]                                            # (hd, hd)
            wo_a = jnp.dot(wo[:, rows], a_h, preferred_element_type=jnp.float32)   # (C, hd)
            weff = weff + jnp.dot(wo_a, wv[rows, :], preferred_element_type=jnp.float32)
            beff = beff + jnp.dot(wo_a, bv[rows, :], preferred_element_type=jnp.float32)
        weff_ref[...] = weff
        beff_ref[...] = beff + bo_ref[...]

    # out_tile = W_eff @ x_tile + b_eff   -- single resident-weight matmul per streamed tile.
    o_ref[0] = (jnp.dot(weff_ref[...], x_ref[0], preferred_element_type=jnp.float32)
                + beff_ref[...])


@functools.partial(jax.jit, static_argnames=("num_heads",))
def self_attention_forward(x, wq, bq, wk, bk, wv, bv, wo, bo, *, num_heads):
    """x: (B, C, H, W); w*: (C, C, 1, 1) Conv2d weights; b*: (C,).  Returns (out, attn)."""
    batch, d_model, height, width = x.shape
    assert d_model % num_heads == 0, "d_model must be divisible by num_heads"
    head_dim = d_model // num_heads
    seq = height * width
    scale = 1.0 / math.sqrt(head_dim)

    x_flat = x.reshape(batch, d_model, seq).astype(jnp.float32)   # seq on the lane axis

    def as_mat(w):   # (C, C, 1, 1) -> (C, C)
        return w.reshape(d_model, d_model).astype(jnp.float32)

    def as_col(b):   # (C,) -> (C, 1): broadcasts over the lane/seq axis inside the kernel
        return b.reshape(d_model, 1).astype(jnp.float32)

    wq_m, wk_m, wv_m, wo_m = as_mat(wq), as_mat(wk), as_mat(wv), as_mat(wo)
    bq_c, bk_c, bv_c, bo_c = as_col(bq), as_col(bk), as_col(bv), as_col(bo)

    t_l = _pick_seq_tile(seq)
    n_l = seq // t_l
    grid = (batch, n_l)

    compiler_params = pltpu.CompilerParams(
        # batch tiles can be split across TensorCores (v7x megacore); the seq axis carries the
        # score reduction / folded-weight reuse, so it must stay "arbitrary" (sequential).
        dimension_semantics=("parallel", "arbitrary"),
        vmem_limit_bytes=32 * 1024 * 1024)

    x_spec = pl.BlockSpec((1, d_model, t_l), lambda b, l: (b, 0, l))
    w_spec = pl.BlockSpec((d_model, d_model), lambda b, l: (0, 0))   # resident across all tiles
    b_spec = pl.BlockSpec((d_model, 1), lambda b, l: (0, 0))
    a_spec = pl.BlockSpec((1, num_heads, head_dim, head_dim), lambda b, l: (b, 0, 0, 0))

    attn = pl.pallas_call(
        functools.partial(_scores_kernel, num_heads, head_dim, scale),
        out_shape=jax.ShapeDtypeStruct((batch, num_heads, head_dim, head_dim), jnp.float32),
        grid=grid,
        in_specs=[x_spec, w_spec, b_spec, w_spec, b_spec],
        out_specs=a_spec,
        scratch_shapes=[pltpu.VMEM((num_heads, head_dim, head_dim), jnp.float32)],
        compiler_params=compiler_params,
    )(x_flat, wq_m, bq_c, wk_m, bk_c)

    out_flat = pl.pallas_call(
        functools.partial(_context_kernel, num_heads, head_dim),
        out_shape=jax.ShapeDtypeStruct((batch, d_model, seq), jnp.float32),
        grid=grid,
        in_specs=[x_spec, a_spec, w_spec, b_spec, w_spec, b_spec],
        out_specs=x_spec,
        scratch_shapes=[pltpu.VMEM((d_model, d_model), jnp.float32),
                        pltpu.VMEM((d_model, 1), jnp.float32)],
        compiler_params=compiler_params,
    )(x_flat, attn, wv_m, bv_c, wo_m, bo_c)

    out = out_flat.reshape(batch, d_model, height, width)
    return out, attn


def _reference_forward(x, wq, bq, wk, bk, wv, bv, wo, bo, num_heads):
    """Pure-JAX reference matching the PyTorch forward exactly."""
    batch, c, h, w = x.shape
    hd = c // num_heads
    seq = h * w

    def conv1x1(inp, weight, bias):
        return (jnp.einsum("bchw,oc->bohw", inp, weight[:, :, 0, 0])
                + bias[None, :, None, None])

    q = conv1x1(x, wq, bq).reshape(batch, num_heads, hd, seq)
    k = conv1x1(x, wk, bk).reshape(batch, num_heads, hd, seq)
    v = conv1x1(x, wv, bv).reshape(batch, num_heads, hd, seq)
    scores = jnp.einsum("bhil,bhjl->bhij", q, k) / math.sqrt(hd)
    attn = jax.nn.softmax(scores, axis=-1)
    ctx = jnp.einsum("bhij,bhjl->bhil", attn, v).reshape(batch, c, h, w)
    out = conv1x1(ctx, wo, bo)
    return out, attn


if __name__ == "__main__":
    B, D_MODEL, NUM_HEADS, H, W = 2, 32, 4, 16, 16
    HEAD_DIM = D_MODEL // NUM_HEADS

    key = jax.random.PRNGKey(0)
    ks = jax.random.split(key, 9)

    x = jax.random.normal(ks[0], (B, D_MODEL, H, W), dtype=jnp.float32)

    # Deterministic synthetic Conv2d(k=1) parameters (fan_in = d_model).
    bound = 1.0 / math.sqrt(D_MODEL)

    def mk_w(k):
        return jax.random.uniform(k, (D_MODEL, D_MODEL, 1, 1), jnp.float32, -bound, bound)

    def mk_b(k):
        return jax.random.uniform(k, (D_MODEL,), jnp.float32, -bound, bound)

    wq, bq = mk_w(ks[1]), mk_b(ks[2])
    wk, bk = mk_w(ks[3]), mk_b(ks[4])
    wv, bv = mk_w(ks[5]), mk_b(ks[6])
    wo, bo = mk_w(ks[7]), mk_b(ks[8])

    out, attn = self_attention_forward(x, wq, bq, wk, bk, wv, bv, wo, bo,
                                       num_heads=NUM_HEADS)
    out = jax.block_until_ready(out)
    attn = jax.block_until_ready(attn)

    ref_out, ref_attn = _reference_forward(x, wq, bq, wk, bk, wv, bv, wo, bo, NUM_HEADS)
    ref_out = jax.block_until_ready(ref_out)
    ref_attn = jax.block_until_ready(ref_attn)

    assert out.shape == (B, D_MODEL, H, W), out.shape
    assert attn.shape == (B, NUM_HEADS, HEAD_DIM, HEAD_DIM), attn.shape
    assert jnp.allclose(attn, ref_attn, atol=2e-4, rtol=2e-4), \
        float(jnp.max(jnp.abs(attn - ref_attn)))
    assert jnp.allclose(out, ref_out, atol=2e-4, rtol=2e-4), \
        float(jnp.max(jnp.abs(out - ref_out)))

    print("KERNEL_OK")
</pallas_src>

<mosaic_0001>
module attributes {stable_mosaic.version = 11 : i64} {
  func.func @_context_kernel(%arg0: i32, %arg1: i32, %arg2: memref<1x32x128xf32, #tpu.memory_space<vmem>>, %arg3: memref<1x4x8x8xf32, #tpu.memory_space<vmem>>, %arg4: memref<32x32xf32, #tpu.memory_space<vmem>>, %arg5: memref<32x1xf32, #tpu.memory_space<vmem>>, %arg6: memref<32x32xf32, #tpu.memory_space<vmem>>, %arg7: memref<32x1xf32, #tpu.memory_space<vmem>>, %arg8: memref<1x32x128xf32, #tpu.memory_space<vmem>>, %arg9: memref<32x32xf32, #tpu.memory_space<vmem>>, %arg10: memref<32x1xf32, #tpu.memory_space<vmem>>) attributes {dimension_semantics = [#tpu.dimension_semantics<parallel>, #tpu.dimension_semantics<arbitrary>], iteration_bounds = array<i64: 2, 2>, scalar_prefetch = 0 : i64, scratch_operands = 2 : i64, tpu.core_type = #tpu.core_type<tc>, window_params = [{transform_indices = @transform_0, window_bounds = array<i64: 1, 32, 128>}, {transform_indices = @transform_1, window_bounds = array<i64: 1, 4, 8, 8>}, {pipeline_mode = #tpu.pipeline_mode<synchronous>, transform_indices = @transform_2, window_bounds = array<i64: 32, 32>}, {pipeline_mode = #tpu.pipeline_mode<synchronous>, transform_indices = @transform_3, window_bounds = array<i64: 32, 1>}, {pipeline_mode = #tpu.pipeline_mode<synchronous>, transform_indices = @transform_4, window_bounds = array<i64: 32, 32>}, {pipeline_mode = #tpu.pipeline_mode<synchronous>, transform_indices = @transform_5, window_bounds = array<i64: 32, 1>}, {transform_indices = @transform_6, window_bounds = array<i64: 1, 32, 128>}]} {
    %c0_i32 = arith.constant 0 : i32
    %0 = arith.cmpi eq, %arg1, %c0_i32 : i32
    %1 = arith.extui %0 : i1 to i32
    %c0_i32_0 = arith.constant 0 : i32
    %2 = arith.cmpi ne, %1, %c0_i32_0 : i32
    scf.if %2 {
      %c0_10 = arith.constant 0 : index
      %c0_11 = arith.constant 0 : index
      %13 = vector.load %arg6[%c0_10, %c0_11] : memref<32x32xf32, #tpu.memory_space<vmem>>, vector<32x32xf32>
      %c0_12 = arith.constant 0 : index
      %c0_13 = arith.constant 0 : index
      %14 = vector.load %arg4[%c0_12, %c0_13] : memref<32x32xf32, #tpu.memory_space<vmem>>, vector<32x32xf32>
      %c0_14 = arith.constant 0 : index
      %c0_15 = arith.constant 0 : index
      %15 = vector.load %arg5[%c0_14, %c0_15] : memref<32x1xf32, #tpu.memory_space<vmem>>, vector<32x1xf32>
      %cst_16 = arith.constant 0.000000e+00 : f32
      %16 = vector.broadcast %cst_16 : f32 to vector<32x32xf32>
      %cst_17 = arith.constant 0.000000e+00 : f32
      %17 = vector.broadcast %cst_17 : f32 to vector<32x1xf32>
      %c0_18 = arith.constant 0 : index
      %c0_19 = arith.constant 0 : index
      %c0_20 = arith.constant 0 : index
      %c0_21 = arith.constant 0 : index
      %18 = vector.load %arg3[%c0_18, %c0_19, %c0_20, %c0_21] : memref<1x4x8x8xf32, #tpu.memory_space<vmem>>, vector<1x1x8x8xf32>
      %19 = vector.shape_cast %18 : vector<1x1x8x8xf32> to vector<8x8xf32>
      %20 = vector.extract_strided_slice %13 {offsets = [0, 0], sizes = [32, 8], strides = [1, 1]} : vector<32x32xf32> to vector<32x8xf32>
      %cst_22 = arith.constant dense<0.000000e+00> : vector<32x8xf32>
      %21 = tpu.matmul %20, %19, %cst_22 {dimension_numbers = #tpu.dot_dimension_numbers<[1], [0], [0], [1], [0, 0, 1, 1], [], []>} : vector<32x8xf32>, vector<8x8xf32>, vector<32x8xf32> -> vector<32x8xf32>
      %22 = vector.extract_strided_slice %14 {offsets = [0, 0], sizes = [8, 32], strides = [1, 1]} : vector<32x32xf32> to vector<8x32xf32>
      %cst_23 = arith.constant dense<0.000000e+00> : vector<32x32xf32>
      %23 = tpu.matmul %21, %22, %cst_23 {dimension_numbers = #tpu.dot_dimension_numbers<[1], [0], [0], [1], [0, 0, 1, 1], [], []>} : vector<32x8xf32>, vector<8x32xf32>, vector<32x32xf32> -> vector<32x32xf32>
      %24 = arith.addf %16, %23 : vector<32x32xf32>
      %25 = vector.extract_strided_slice %15 {offsets = [0, 0], sizes = [8, 1], strides = [1, 1]} : vector<32x1xf32> to vector<8x1xf32>
      %cst_24 = arith.constant dense<0.000000e+00> : vector<32x1xf32>
      %26 = tpu.matmul %21, %25, %cst_24 {dimension_numbers = #tpu.dot_dimension_numbers<[1], [0], [0], [1], [0, 0, 1, 1], [], []>} : vector<32x8xf32>, vector<8x1xf32>, vector<32x1xf32> -> vector<32x1xf32>
      %27 = arith.addf %17, %26 : vector<32x1xf32>
      %c0_25 = arith.constant 0 : index
      %c1 = arith.constant 1 : index
      %c0_26 = arith.constant 0 : index
      %c0_27 = arith.constant 0 : index
      %28 = vector.load %arg3[%c0_25, %c1, %c0_26, %c0_27] : memref<1x4x8x8xf32, #tpu.memory_space<vmem>>, vector<1x1x8x8xf32>
      %29 = vector.shape_cast %28 : vector<1x1x8x8xf32> to vector<8x8xf32>
      %30 = vector.extract_strided_slice %13 {offsets = [0, 8], sizes = [32, 8], strides = [1, 1]} : vector<32x32xf32> to vector<32x8xf32>
      %cst_28 = arith.constant dense<0.000000e+00> : vector<32x8xf32>
      %31 = tpu.matmul %30, %29, %cst_28 {dimension_numbers = #tpu.dot_dimension_numbers<[1], [0], [0], [1], [0, 0, 1, 1], [], []>} : vector<32x8xf32>, vector<8x8xf32>, vector<32x8xf32> -> vector<32x8xf32>
      %32 = vector.extract_strided_slice %14 {offsets = [8, 0], sizes = [8, 32], strides = [1, 1]} : vector<32x32xf32> to vector<8x32xf32>
      %cst_29 = arith.constant dense<0.000000e+00> : vector<32x32xf32>
      %33 = tpu.matmul %31, %32, %cst_29 {dimension_numbers = #tpu.dot_dimension_numbers<[1], [0], [0], [1], [0, 0, 1, 1], [], []>} : vector<32x8xf32>, vector<8x32xf32>, vector<32x32xf32> -> vector<32x32xf32>
      %34 = arith.addf %24, %33 : vector<32x32xf32>
      %35 = vector.extract_strided_slice %15 {offsets = [8, 0], sizes = [8, 1], strides = [1, 1]} : vector<32x1xf32> to vector<8x1xf32>
      %cst_30 = arith.constant dense<0.000000e+00> : vector<32x1xf32>
      %36 = tpu.matmul %31, %35, %cst_30 {dimension_numbers = #tpu.dot_dimension_numbers<[1], [0], [0], [1], [0, 0, 1, 1], [], []>} : vector<32x8xf32>, vector<8x1xf32>, vector<32x1xf32> -> vector<32x1xf32>
      %37 = arith.addf %27, %36 : vector<32x1xf32>
      %c0_31 = arith.constant 0 : index
      %c2 = arith.constant 2 : index
      %c0_32 = arith.constant 0 : index
      %c0_33 = arith.constant 0 : index
      %38 = vector.load %arg3[%c0_31, %c2, %c0_32, %c0_33] : memref<1x4x8x8xf32, #tpu.memory_space<vmem>>, vector<1x1x8x8xf32>
      %39 = vector.shape_cast %38 : vector<1x1x8x8xf32> to vector<8x8xf32>
      %40 = vector.extract_strided_slice %13 {offsets = [0, 16], sizes = [32, 8], strides = [1, 1]} : vector<32x32xf32> to vector<32x8xf32>
      %cst_34 = arith.constant dense<0.000000e+00> : vector<32x8xf32>
      %41 = tpu.matmul %40, %39, %cst_34 {dimension_numbers = #tpu.dot_dimension_numbers<[1], [0], [0], [1], [0, 0, 1, 1], [], []>} : vector<32x8xf32>, vector<8x8xf32>, vector<32x8xf32> -> vector<32x8xf32>
      %42 = vector.extract_strided_slice %14 {offsets = [16, 0], sizes = [8, 32], strides = [1, 1]} : vector<32x32xf32> to vector<8x32xf32>
      %cst_35 = arith.constant dense<0.000000e+00> : vector<32x32xf32>
      %43 = tpu.matmul %41, %42, %cst_35 {dimension_numbers = #tpu.dot_dimension_numbers<[1], [0], [0], [1], [0, 0, 1, 1], [], []>} : vector<32x8xf32>, vector<8x32xf32>, vector<32x32xf32> -> vector<32x32xf32>
      %44 = arith.addf %34, %43 : vector<32x32xf32>
      %45 = vector.extract_strided_slice %15 {offsets = [16, 0], sizes = [8, 1], strides = [1, 1]} : vector<32x1xf32> to vector<8x1xf32>
      %cst_36 = arith.constant dense<0.000000e+00> : vector<32x1xf32>
      %46 = tpu.matmul %41, %45, %cst_36 {dimension_numbers = #tpu.dot_dimension_numbers<[1], [0], [0], [1], [0, 0, 1, 1], [], []>} : vector<32x8xf32>, vector<8x1xf32>, vector<32x1xf32> -> vector<32x1xf32>
      %47 = arith.addf %37, %46 : vector<32x1xf32>
      %c0_37 = arith.constant 0 : index
      %c3 = arith.constant 3 : index
      %c0_38 = arith.constant 0 : index
      %c0_39 = arith.constant 0 : index
      %48 = vector.load %arg3[%c0_37, %c3, %c0_38, %c0_39] : memref<1x4x8x8xf32, #tpu.memory_space<vmem>>, vector<1x1x8x8xf32>
      %49 = vector.shape_cast %48 : vector<1x1x8x8xf32> to vector<8x8xf32>
      %50 = vector.extract_strided_slice %13 {offsets = [0, 24], sizes = [32, 8], strides = [1, 1]} : vector<32x32xf32> to vector<32x8xf32>
      %cst_40 = arith.constant dense<0.000000e+00> : vector<32x8xf32>
      %51 = tpu.matmul %50, %49, %cst_40 {dimension_numbers = #tpu.dot_dimension_numbers<[1], [0], [0], [1], [0, 0, 1, 1], [], []>} : vector<32x8xf32>, vector<8x8xf32>, vector<32x8xf32> -> vector<32x8xf32>
      %52 = vector.extract_strided_slice %14 {offsets = [24, 0], sizes = [8, 32], strides = [1, 1]} : vector<32x32xf32> to vector<8x32xf32>
      %cst_41 = arith.constant dense<0.000000e+00> : vector<32x32xf32>
      %53 = tpu.matmul %51, %52, %cst_41 {dimension_numbers = #tpu.dot_dimension_numbers<[1], [0], [0], [1], [0, 0, 1, 1], [], []>} : vector<32x8xf32>, vector<8x32xf32>, vector<32x32xf32> -> vector<32x32xf32>
      %54 = arith.addf %44, %53 : vector<32x32xf32>
      %55 = vector.extract_strided_slice %15 {offsets = [24, 0], sizes = [8, 1], strides = [1, 1]} : vector<32x1xf32> to vector<8x1xf32>
      %cst_42 = arith.constant dense<0.000000e+00> : vector<32x1xf32>
      %56 = tpu.matmul %51, %55, %cst_42 {dimension_numbers = #tpu.dot_dimension_numbers<[1], [0], [0], [1], [0, 0, 1, 1], [], []>} : vector<32x8xf32>, vector<8x1xf32>, vector<32x1xf32> -> vector<32x1xf32>
      %57 = arith.addf %47, %56 : vector<32x1xf32>
      %c0_43 = arith.constant 0 : index
      %c0_44 = arith.constant 0 : index
      %58 = vector.load %arg9[%c0_43, %c0_44] : memref<32x32xf32, #tpu.memory_space<vmem>>, vector<32x32xf32>
      tpu.vector_store %arg9[%c0_43, %c0_44], %54 {strides = array<i32>} : memref<32x32xf32, #tpu.memory_space<vmem>>, vector<32x32xf32>,
      %c0_45 = arith.constant 0 : index
      %c0_46 = arith.constant 0 : index
      %59 = vector.load %arg7[%c0_45, %c0_46] : memref<32x1xf32, #tpu.memory_space<vmem>>, vector<32x1xf32>
      %60 = arith.addf %57, %59 : vector<32x1xf32>
      %c0_47 = arith.constant 0 : index
      %c0_48 = arith.constant 0 : index
      %61 = vector.load %arg10[%c0_47, %c0_48] : memref<32x1xf32, #tpu.memory_space<vmem>>, vector<32x1xf32>
      tpu.vector_store %arg10[%c0_47, %c0_48], %60 {strides = array<i32>} : memref<32x1xf32, #tpu.memory_space<vmem>>, vector<32x1xf32>,
    } else {
    }
    %c0 = arith.constant 0 : index
    %c0_1 = arith.constant 0 : index
    %3 = vector.load %arg9[%c0, %c0_1] : memref<32x32xf32, #tpu.memory_space<vmem>>, vector<32x32xf32>
    %c0_2 = arith.constant 0 : index
    %c0_3 = arith.constant 0 : index
    %c0_4 = arith.constant 0 : index
    %4 = vector.load %arg2[%c0_2, %c0_3, %c0_4] : memref<1x32x128xf32, #tpu.memory_space<vmem>>, vector<1x32x128xf32>
    %5 = vector.shape_cast %4 : vector<1x32x128xf32> to vector<32x128xf32>
    %cst = arith.constant dense<0.000000e+00> : vector<32x128xf32>
    %6 = tpu.matmul %3, %5, %cst {dimension_numbers = #tpu.dot_dimension_numbers<[1], [0], [0], [1], [0, 0, 1, 1], [], []>} : vector<32x32xf32>, vector<32x128xf32>, vector<32x128xf32> -> vector<32x128xf32>
    %c0_5 = arith.constant 0 : index
    %c0_6 = arith.constant 0 : index
    %7 = vector.load %arg10[%c0_5, %c0_6] : memref<32x1xf32, #tpu.memory_space<vmem>>, vector<32x1xf32>
    %8 = vector.broadcast %7 : vector<32x1xf32> to vector<32x128xf32>
    %9 = arith.addf %6, %8 : vector<32x128xf32>
    %c0_7 = arith.constant 0 : index
    %c0_8 = arith.constant 0 : index
    %c0_9 = arith.constant 0 : index
    %10 = vector.load %arg8[%c0_7, %c0_8, %c0_9] : memref<1x32x128xf32, #tpu.memory_space<vmem>>, vector<1x32x128xf32>
    %11 = vector.shape_cast %10 : vector<1x32x128xf32> to vector<32x128xf32>
    %12 = vector.shape_cast %9 : vector<32x128xf32> to vector<1x32x128xf32>
    tpu.vector_store %arg8[%c0_7, %c0_8, %c0_9], %12 {strides = array<i32>} : memref<1x32x128xf32, #tpu.memory_space<vmem>>, vector<1x32x128xf32>,
    return
  }
  func.func @transform_0(%arg0: i32, %arg1: i32) -> (i32, i32, i32) {
    %c0_i32 = arith.constant 0 : i32
    %c0_i32_0 = arith.constant 0 : i32
    return %arg0, %c0_i32, %arg1 : i32, i32, i32
  }
  func.func @transform_1(%arg0: i32, %arg1: i32) -> (i32, i32, i32, i32) {
    %c0_i32 = arith.constant 0 : i32
    %c0_i32_0 = arith.constant 0 : i32
    %c0_i32_1 = arith.constant 0 : i32
    %c0_i32_2 = arith.constant 0 : i32
    return %arg0, %c0_i32, %c0_i32_0, %c0_i32_1 : i32, i32, i32, i32
  }
  func.func @transform_2(%arg0: i32, %arg1: i32) -> (i32, i32) {
    %c0_i32 = arith.constant 0 : i32
    %c0_i32_0 = arith.constant 0 : i32
    %c0_i32_1 = arith.constant 0 : i32
    return %c0_i32, %c0_i32_0 : i32, i32
  }
  func.func @transform_3(%arg0: i32, %arg1: i32) -> (i32, i32) {
    %c0_i32 = arith.constant 0 : i32
    %c0_i32_0 = arith.constant 0 : i32
    %c0_i32_1 = arith.constant 0 : i32
    return %c0_i32, %c0_i32_0 : i32, i32
  }
  func.func @transform_4(%arg0: i32, %arg1: i32) -> (i32, i32) {
    %c0_i32 = arith.constant 0 : i32
    %c0_i32_0 = arith.constant 0 : i32
    %c0_i32_1 = arith.constant 0 : i32
    return %c0_i32, %c0_i32_0 : i32, i32
  }
  func.func @transform_5(%arg0: i32, %arg1: i32) -> (i32, i32) {
    %c0_i32 = arith.constant 0 : i32
    %c0_i32_0 = arith.constant 0 : i32
    %c0_i32_1 = arith.constant 0 : i32
    return %c0_i32, %c0_i32_0 : i32, i32
  }
  func.func @transform_6(%arg0: i32, %arg1: i32) -> (i32, i32, i32) {
    %c0_i32 = arith.constant 0 : i32
    %c0_i32_0 = arith.constant 0 : i32
    return %arg0, %c0_i32, %arg1 : i32, i32, i32
  }
}

module attributes {stable_mosaic.version = 11 : i64} {
  func.func @_scores_kernel(%arg0: i32, %arg1: i32, %arg2: memref<1x32x128xf32, #tpu.memory_space<vmem>>, %arg3: memref<32x32xf32, #tpu.memory_space<vmem>>, %arg4: memref<32x1xf32, #tpu.memory_space<vmem>>, %arg5: memref<32x32xf32, #tpu.memory_space<vmem>>, %arg6: memref<32x1xf32, #tpu.memory_space<vmem>>, %arg7: memref<1x4x8x8xf32, #tpu.memory_space<vmem>>, %arg8: memref<4x8x8xf32, #tpu.memory_space<vmem>>) attributes {dimension_semantics = [#tpu.dimension_semantics<parallel>, #tpu.dimension_semantics<arbitrary>], iteration_bounds = array<i64: 2, 2>, scalar_prefetch = 0 : i64, scratch_operands = 1 : i64, tpu.core_type = #tpu.core_type<tc>, window_params = [{transform_indices = @transform_0, window_bounds = array<i64: 1, 32, 128>}, {pipeline_mode = #tpu.pipeline_mode<synchronous>, transform_indices = @transform_1, window_bounds = array<i64: 32, 32>}, {pipeline_mode = #tpu.pipeline_mode<synchronous>, transform_indices = @transform_2, window_bounds = array<i64: 32, 1>}, {pipeline_mode = #tpu.pipeline_mode<synchronous>, transform_indices = @transform_3, window_bounds = array<i64: 32, 32>}, {pipeline_mode = #tpu.pipeline_mode<synchronous>, transform_indices = @transform_4, window_bounds = array<i64: 32, 1>}, {transform_indices = @transform_5, window_bounds = array<i64: 1, 4, 8, 8>}]} {
    %c0_i32 = arith.constant 0 : i32
    %0 = arith.cmpi eq, %arg1, %c0_i32 : i32
    %1 = arith.extui %0 : i1 to i32
    %c0_i32_0 = arith.constant 0 : i32
    %2 = arith.cmpi ne, %1, %c0_i32_0 : i32
    scf.if %2 {
      %cst_38 = arith.constant 0.000000e+00 : f32
      %54 = vector.broadcast %cst_38 : f32 to vector<4x8x8xf32>
      %c0_39 = arith.constant 0 : index
      %c0_40 = arith.constant 0 : index
      %c0_41 = arith.constant 0 : index
      %55 = vector.load %arg8[%c0_39, %c0_40, %c0_41] : memref<4x8x8xf32, #tpu.memory_space<vmem>>, vector<4x8x8xf32>
      tpu.vector_store %arg8[%c0_39, %c0_40, %c0_41], %54 {strides = array<i32>} : memref<4x8x8xf32, #tpu.memory_space<vmem>>, vector<4x8x8xf32>,
    } else {
    }
    %c0 = arith.constant 0 : index
    %c0_1 = arith.constant 0 : index
    %c0_2 = arith.constant 0 : index
    %3 = vector.load %arg2[%c0, %c0_1, %c0_2] : memref<1x32x128xf32, #tpu.memory_space<vmem>>, vector<1x32x128xf32>
    %4 = vector.shape_cast %3 : vector<1x32x128xf32> to vector<32x128xf32>
    %c0_3 = arith.constant 0 : index
    %c0_4 = arith.constant 0 : index
    %5 = vector.load %arg3[%c0_3, %c0_4] : memref<32x32xf32, #tpu.memory_space<vmem>>, vector<32x32xf32>
    %cst = arith.constant dense<0.000000e+00> : vector<32x128xf32>
    %6 = tpu.matmul %5, %4, %cst {dimension_numbers = #tpu.dot_dimension_numbers<[1], [0], [0], [1], [0, 0, 1, 1], [], []>} : vector<32x32xf32>, vector<32x128xf32>, vector<32x128xf32> -> vector<32x128xf32>
    %c0_5 = arith.constant 0 : index
    %c0_6 = arith.constant 0 : index
    %7 = vector.load %arg4[%c0_5, %c0_6] : memref<32x1xf32, #tpu.memory_space<vmem>>, vector<32x1xf32>
    %8 = vector.broadcast %7 : vector<32x1xf32> to vector<32x128xf32>
    %9 = arith.addf %6, %8 : vector<32x128xf32>
    %c0_7 = arith.constant 0 : index
    %c0_8 = arith.constant 0 : index
    %10 = vector.load %arg5[%c0_7, %c0_8] : memref<32x32xf32, #tpu.memory_space<vmem>>, vector<32x32xf32>
    %cst_9 = arith.constant dense<0.000000e+00> : vector<32x128xf32>
    %11 = tpu.matmul %10, %4, %cst_9 {dimension_numbers = #tpu.dot_dimension_numbers<[1], [0], [0], [1], [0, 0, 1, 1], [], []>} : vector<32x32xf32>, vector<32x128xf32>, vector<32x128xf32> -> vector<32x128xf32>
    %c0_10 = arith.constant 0 : index
    %c0_11 = arith.constant 0 : index
    %12 = vector.load %arg6[%c0_10, %c0_11] : memref<32x1xf32, #tpu.memory_space<vmem>>, vector<32x1xf32>
    %13 = vector.broadcast %12 : vector<32x1xf32> to vector<32x128xf32>
    %14 = arith.addf %11, %13 : vector<32x128xf32>
    %c0_12 = arith.constant 0 : index
    %c0_13 = arith.constant 0 : index
    %c0_14 = arith.constant 0 : index
    %15 = vector.load %arg8[%c0_12, %c0_13, %c0_14] : memref<4x8x8xf32, #tpu.memory_space<vmem>>, vector<1x8x8xf32>
    %16 = vector.shape_cast %15 : vector<1x8x8xf32> to vector<8x8xf32>
    %17 = vector.extract_strided_slice %9 {offsets = [0, 0], sizes = [8, 128], strides = [1, 1]} : vector<32x128xf32> to vector<8x128xf32>
    %18 = vector.extract_strided_slice %14 {offsets = [0, 0], sizes = [8, 128], strides = [1, 1]} : vector<32x128xf32> to vector<8x128xf32>
    %cst_15 = arith.constant dense<0.000000e+00> : vector<8x8xf32>
    %19 = tpu.matmul %17, %18, %cst_15 {dimension_numbers = #tpu.dot_dimension_numbers<[1], [1], [0], [0], [0, 0, 1, 0], [], []>} : vector<8x128xf32>, vector<8x128xf32>, vector<8x8xf32> -> vector<8x8xf32>
    %20 = arith.addf %16, %19 : vector<8x8xf32>
    %c0_16 = arith.constant 0 : index
    %c0_17 = arith.constant 0 : index
    %c0_18 = arith.constant 0 : index
    %21 = vector.load %arg8[%c0_16, %c0_17, %c0_18] : memref<4x8x8xf32, #tpu.memory_space<vmem>>, vector<1x8x8xf32>
    %22 = vector.shape_cast %21 : vector<1x8x8xf32> to vector<8x8xf32>
    %23 = vector.shape_cast %20 : vector<8x8xf32> to vector<1x8x8xf32>
    tpu.vector_store %arg8[%c0_16, %c0_17, %c0_18], %23 {strides = array<i32>} : memref<4x8x8xf32, #tpu.memory_space<vmem>>, vector<1x8x8xf32>,
    %c1 = arith.constant 1 : index
    %c0_19 = arith.constant 0 : index
    %c0_20 = arith.constant 0 : index
    %24 = vector.load %arg8[%c1, %c0_19, %c0_20] : memref<4x8x8xf32, #tpu.memory_space<vmem>>, vector<1x8x8xf32>
    %25 = vector.shape_cast %24 : vector<1x8x8xf32> to vector<8x8xf32>
    %26 = vector.extract_strided_slice %9 {offsets = [8, 0], sizes = [8, 128], strides = [1, 1]} : vector<32x128xf32> to vector<8x128xf32>
    %27 = vector.extract_strided_slice %14 {offsets = [8, 0], sizes = [8, 128], strides = [1, 1]} : vector<32x128xf32> to vector<8x128xf32>
    %cst_21 = arith.constant dense<0.000000e+00> : vector<8x8xf32>
    %28 = tpu.matmul %26, %27, %cst_21 {dimension_numbers = #tpu.dot_dimension_numbers<[1], [1], [0], [0], [0, 0, 1, 0], [], []>} : vector<8x128xf32>, vector<8x128xf32>, vector<8x8xf32> -> vector<8x8xf32>
    %29 = arith.addf %25, %28 : vector<8x8xf32>
    %c1_22 = arith.constant 1 : index
    %c0_23 = arith.constant 0 : index
    %c0_24 = arith.constant 0 : index
    %30 = vector.load %arg8[%c1_22, %c0_23, %c0_24] : memref<4x8x8xf32, #tpu.memory_space<vmem>>, vector<1x8x8xf32>
    %31 = vector.shape_cast %30 : vector<1x8x8xf32> to vector<8x8xf32>
    %32 = vector.shape_cast %29 : vector<8x8xf32> to vector<1x8x8xf32>
    tpu.vector_store %arg8[%c1_22, %c0_23, %c0_24], %32 {strides = array<i32>} : memref<4x8x8xf32, #tpu.memory_space<vmem>>, vector<1x8x8xf32>,
    %c2 = arith.constant 2 : index
    %c0_25 = arith.constant 0 : index
    %c0_26 = arith.constant 0 : index
    %33 = vector.load %arg8[%c2, %c0_25, %c0_26] : memref<4x8x8xf32, #tpu.memory_space<vmem>>, vector<1x8x8xf32>
    %34 = vector.shape_cast %33 : vector<1x8x8xf32> to vector<8x8xf32>
    %35 = vector.extract_strided_slice %9 {offsets = [16, 0], sizes = [8, 128], strides = [1, 1]} : vector<32x128xf32> to vector<8x128xf32>
    %36 = vector.extract_strided_slice %14 {offsets = [16, 0], sizes = [8, 128], strides = [1, 1]} : vector<32x128xf32> to vector<8x128xf32>
    %cst_27 = arith.constant dense<0.000000e+00> : vector<8x8xf32>
    %37 = tpu.matmul %35, %36, %cst_27 {dimension_numbers = #tpu.dot_dimension_numbers<[1], [1], [0], [0], [0, 0, 1, 0], [], []>} : vector<8x128xf32>, vector<8x128xf32>, vector<8x8xf32> -> vector<8x8xf32>
    %38 = arith.addf %34, %37 : vector<8x8xf32>
    %c2_28 = arith.constant 2 : index
    %c0_29 = arith.constant 0 : index
    %c0_30 = arith.constant 0 : index
    %39 = vector.load %arg8[%c2_28, %c0_29, %c0_30] : memref<4x8x8xf32, #tpu.memory_space<vmem>>, vector<1x8x8xf32>
    %40 = vector.shape_cast %39 : vector<1x8x8xf32> to vector<8x8xf32>
    %41 = vector.shape_cast %38 : vector<8x8xf32> to vector<1x8x8xf32>
    tpu.vector_store %arg8[%c2_28, %c0_29, %c0_30], %41 {strides = array<i32>} : memref<4x8x8xf32, #tpu.memory_space<vmem>>, vector<1x8x8xf32>,
    %c3 = arith.constant 3 : index
    %c0_31 = arith.constant 0 : index
    %c0_32 = arith.constant 0 : index
    %42 = vector.load %arg8[%c3, %c0_31, %c0_32] : memref<4x8x8xf32, #tpu.memory_space<vmem>>, vector<1x8x8xf32>
    %43 = vector.shape_cast %42 : vector<1x8x8xf32> to vector<8x8xf32>
    %44 = vector.extract_strided_slice %9 {offsets = [24, 0], sizes = [8, 128], strides = [1, 1]} : vector<32x128xf32> to vector<8x128xf32>
    %45 = vector.extract_strided_slice %14 {offsets = [24, 0], sizes = [8, 128], strides = [1, 1]} : vector<32x128xf32> to vector<8x128xf32>
    %cst_33 = arith.constant dense<0.000000e+00> : vector<8x8xf32>
    %46 = tpu.matmul %44, %45, %cst_33 {dimension_numbers = #tpu.dot_dimension_numbers<[1], [1], [0], [0], [0, 0, 1, 0], [], []>} : vector<8x128xf32>, vector<8x128xf32>, vector<8x8xf32> -> vector<8x8xf32>
    %47 = arith.addf %43, %46 : vector<8x8xf32>
    %c3_34 = arith.constant 3 : index
    %c0_35 = arith.constant 0 : index
    %c0_36 = arith.constant 0 : index
    %48 = vector.load %arg8[%c3_34, %c0_35, %c0_36] : memref<4x8x8xf32, #tpu.memory_space<vmem>>, vector<1x8x8xf32>
    %49 = vector.shape_cast %48 : vector<1x8x8xf32> to vector<8x8xf32>
    %50 = vector.shape_cast %47 : vector<8x8xf32> to vector<1x8x8xf32>
    tpu.vector_store %arg8[%c3_34, %c0_35, %c0_36], %50 {strides = array<i32>} : memref<4x8x8xf32, #tpu.memory_space<vmem>>, vector<1x8x8xf32>,
    %c1_i32 = arith.constant 1 : i32
    %51 = arith.cmpi eq, %arg1, %c1_i32 : i32
    %52 = arith.extui %51 : i1 to i32
    %c0_i32_37 = arith.constant 0 : i32
    %53 = arith.cmpi ne, %52, %c0_i32_37 : i32
    scf.if %53 {
      %c0_38 = arith.constant 0 : index
      %c0_39 = arith.constant 0 : index
      %c0_40 = arith.constant 0 : index
      %54 = vector.load %arg8[%c0_38, %c0_39, %c0_40] : memref<4x8x8xf32, #tpu.memory_space<vmem>>, vector<1x8x8xf32>
      %55 = vector.shape_cast %54 : vector<1x8x8xf32> to vector<8x8xf32>
      %cst_41 = arith.constant 0.353553385 : f32
      %56 = vector.broadcast %cst_41 : f32 to vector<8x8xf32>
      %57 = arith.mulf %55, %56 : vector<8x8xf32>
      %cst_42 = arith.constant dense<0xFF800000> : vector<8xf32>
      %58 = vector.multi_reduction <maximumf>, %57, %cst_42 [1] : vector<8x8xf32> to vector<8xf32>
      %59 = vector.shape_cast %58 : vector<8xf32> to vector<8x1xf32>
      %60 = vector.broadcast %59 : vector<8x1xf32> to vector<8x8xf32>
      %61 = arith.subf %57, %60 : vector<8x8xf32>
      %62 = math.exp %61 : vector<8x8xf32>
      %cst_43 = arith.constant dense<0.000000e+00> : vector<8xf32>
      %63 = vector.multi_reduction <add>, %62, %cst_43 [1] : vector<8x8xf32> to vector<8xf32>
      %64 = vector.shape_cast %63 : vector<8xf32> to vector<8x1xf32>
      %65 = vector.broadcast %64 : vector<8x1xf32> to vector<8x8xf32>
      %66 = arith.divf %62, %65 : vector<8x8xf32>
      %c0_44 = arith.constant 0 : index
      %c0_45 = arith.constant 0 : index
      %c0_46 = arith.constant 0 : index
      %c0_47 = arith.constant 0 : index
      %67 = vector.load %arg7[%c0_44, %c0_45, %c0_46, %c0_47] : memref<1x4x8x8xf32, #tpu.memory_space<vmem>>, vector<1x1x8x8xf32>
      %68 = vector.shape_cast %67 : vector<1x1x8x8xf32> to vector<8x8xf32>
      %69 = vector.shape_cast %66 : vector<8x8xf32> to vector<1x1x8x8xf32>
      tpu.vector_store %arg7[%c0_44, %c0_45, %c0_46, %c0_47], %69 {strides = array<i32>} : memref<1x4x8x8xf32, #tpu.memory_space<vmem>>, vector<1x1x8x8xf32>,
      %c1_48 = arith.constant 1 : index
      %c0_49 = arith.constant 0 : index
      %c0_50 = arith.constant 0 : index
      %70 = vector.load %arg8[%c1_48, %c0_49, %c0_50] : memref<4x8x8xf32, #tpu.memory_space<vmem>>, vector<1x8x8xf32>
      %71 = vector.shape_cast %70 : vector<1x8x8xf32> to vector<8x8xf32>
      %cst_51 = arith.constant 0.353553385 : f32
      %72 = vector.broadcast %cst_51 : f32 to vector<8x8xf32>
      %73 = arith.mulf %71, %72 : vector<8x8xf32>
      %cst_52 = arith.constant dense<0xFF800000> : vector<8xf32>
      %74 = vector.multi_reduction <maximumf>, %73, %cst_52 [1] : vector<8x8xf32> to vector<8xf32>
      %75 = vector.shape_cast %74 : vector<8xf32> to vector<8x1xf32>
      %76 = vector.broadcast %75 : vector<8x1xf32> to vector<8x8xf32>
      %77 = arith.subf %73, %76 : vector<8x8xf32>
      %78 = math.exp %77 : vector<8x8xf32>
      %cst_53 = arith.constant dense<0.000000e+00> : vector<8xf32>
      %79 = vector.multi_reduction <add>, %78, %cst_53 [1] : vector<8x8xf32> to vector<8xf32>
      %80 = vector.shape_cast %79 : vector<8xf32> to vector<8x1xf32>
      %81 = vector.broadcast %80 : vector<8x1xf32> to vector<8x8xf32>
      %82 = arith.divf %78, %81 : vector<8x8xf32>
      %c0_54 = arith.constant 0 : index
      %c1_55 = arith.constant 1 : index
      %c0_56 = arith.constant 0 : index
      %c0_57 = arith.constant 0 : index
      %83 = vector.load %arg7[%c0_54, %c1_55, %c0_56, %c0_57] : memref<1x4x8x8xf32, #tpu.memory_space<vmem>>, vector<1x1x8x8xf32>
      %84 = vector.shape_cast %83 : vector<1x1x8x8xf32> to vector<8x8xf32>
      %85 = vector.shape_cast %82 : vector<8x8xf32> to vector<1x1x8x8xf32>
      tpu.vector_store %arg7[%c0_54, %c1_55, %c0_56, %c0_57], %85 {strides = array<i32>} : memref<1x4x8x8xf32, #tpu.memory_space<vmem>>, vector<1x1x8x8xf32>,
      %c2_58 = arith.constant 2 : index
      %c0_59 = arith.constant 0 : index
      %c0_60 = arith.constant 0 : index
      %86 = vector.load %arg8[%c2_58, %c0_59, %c0_60] : memref<4x8x8xf32, #tpu.memory_space<vmem>>, vector<1x8x8xf32>
      %87 = vector.shape_cast %86 : vector<1x8x8xf32> to vector<8x8xf32>
      %cst_61 = arith.constant 0.353553385 : f32
      %88 = vector.broadcast %cst_61 : f32 to vector<8x8xf32>
      %89 = arith.mulf %87, %88 : vector<8x8xf32>
      %cst_62 = arith.constant dense<0xFF800000> : vector<8xf32>
      %90 = vector.multi_reduction <maximumf>, %89, %cst_62 [1] : vector<8x8xf32> to vector<8xf32>
      %91 = vector.shape_cast %90 : vector<8xf32> to vector<8x1xf32>
      %92 = vector.broadcast %91 : vector<8x1xf32> to vector<8x8xf32>
      %93 = arith.subf %89, %92 : vector<8x8xf32>
      %94 = math.exp %93 : vector<8x8xf32>
      %cst_63 = arith.constant dense<0.000000e+00> : vector<8xf32>
      %95 = vector.multi_reduction <add>, %94, %cst_63 [1] : vector<8x8xf32> to vector<8xf32>
      %96 = vector.shape_cast %95 : vector<8xf32> to vector<8x1xf32>
      %97 = vector.broadcast %96 : vector<8x1xf32> to vector<8x8xf32>
      %98 = arith.divf %94, %97 : vector<8x8xf32>
      %c0_64 = arith.constant 0 : index
      %c2_65 = arith.constant 2 : index
      %c0_66 = arith.constant 0 : index
      %c0_67 = arith.constant 0 : index
      %99 = vector.load %arg7[%c0_64, %c2_65, %c0_66, %c0_67] : memref<1x4x8x8xf32, #tpu.memory_space<vmem>>, vector<1x1x8x8xf32>
      %100 = vector.shape_cast %99 : vector<1x1x8x8xf32> to vector<8x8xf32>
      %101 = vector.shape_cast %98 : vector<8x8xf32> to vector<1x1x8x8xf32>
      tpu.vector_store %arg7[%c0_64, %c2_65, %c0_66, %c0_67], %101 {strides = array<i32>} : memref<1x4x8x8xf32, #tpu.memory_space<vmem>>, vector<1x1x8x8xf32>,
      %c3_68 = arith.constant 3 : index
      %c0_69 = arith.constant 0 : index
      %c0_70 = arith.constant 0 : index
      %102 = vector.load %arg8[%c3_68, %c0_69, %c0_70] : memref<4x8x8xf32, #tpu.memory_space<vmem>>, vector<1x8x8xf32>
      %103 = vector.shape_cast %102 : vector<1x8x8xf32> to vector<8x8xf32>
      %cst_71 = arith.constant 0.353553385 : f32
      %104 = vector.broadcast %cst_71 : f32 to vector<8x8xf32>
      %105 = arith.mulf %103, %104 : vector<8x8xf32>
      %cst_72 = arith.constant dense<0xFF800000> : vector<8xf32>
      %106 = vector.multi_reduction <maximumf>, %105, %cst_72 [1] : vector<8x8xf32> to vector<8xf32>
      %107 = vector.shape_cast %106 : vector<8xf32> to vector<8x1xf32>
      %108 = vector.broadcast %107 : vector<8x1xf32> to vector<8x8xf32>
      %109 = arith.subf %105, %108 : vector<8x8xf32>
      %110 = math.exp %109 : vector<8x8xf32>
      %cst_73 = arith.constant dense<0.000000e+00> : vector<8xf32>
      %111 = vector.multi_reduction <add>, %110, %cst_73 [1] : vector<8x8xf32> to vector<8xf32>
      %112 = vector.shape_cast %111 : vector<8xf32> to vector<8x1xf32>
      %113 = vector.broadcast %112 : vector<8x1xf32> to vector<8x8xf32>
      %114 = arith.divf %110, %113 : vector<8x8xf32>
      %c0_74 = arith.constant 0 : index
      %c3_75 = arith.constant 3 : index
      %c0_76 = arith.constant 0 : index
      %c0_77 = arith.constant 0 : index
      %115 = vector.load %arg7[%c0_74, %c3_75, %c0_76, %c0_77] : memref<1x4x8x8xf32, #tpu.memory_space<vmem>>, vector<1x1x8x8xf32>
      %116 = vector.shape_cast %115 : vector<1x1x8x8xf32> to vector<8x8xf32>
      %117 = vector.shape_cast %114 : vector<8x8xf32> to vector<1x1x8x8xf32>
      tpu.vector_store %arg7[%c0_74, %c3_75, %c0_76, %c0_77], %117 {strides = array<i32>} : memref<1x4x8x8xf32, #tpu.memory_space<vmem>>, vector<1x1x8x8xf32>,
    } else {
    }
    return
  }
  func.func @transform_0(%arg0: i32, %arg1: i32) -> (i32, i32, i32) {
    %c0_i32 = arith.constant 0 : i32
    %c0_i32_0 = arith.constant 0 : i32
    return %arg0, %c0_i32, %arg1 : i32, i32, i32
  }
  func.func @transform_1(%arg0: i32, %arg1: i32) -> (i32, i32) {
    %c0_i32 = arith.constant 0 : i32
    %c0_i32_0 = arith.constant 0 : i32
    %c0_i32_1 = arith.constant 0 : i32
    return %c0_i32, %c0_i32_0 : i32, i32
  }
  func.func @transform_2(%arg0: i32, %arg1: i32) -> (i32, i32) {
    %c0_i32 = arith.constant 0 : i32
    %c0_i32_0 = arith.constant 0 : i32
    %c0_i32_1 = arith.constant 0 : i32
    return %c0_i32, %c0_i32_0 : i32, i32
  }
  func.func @transform_3(%arg0: i32, %arg1: i32) -> (i32, i32) {
    %c0_i32 = arith.constant 0 : i32
    %c0_i32_0 = arith.constant 0 : i32
    %c0_i32_1 = arith.constant 0 : i32
    return %c0_i32, %c0_i32_0 : i32, i32
  }
  func.func @transform_4(%arg0: i32, %arg1: i32) -> (i32, i32) {
    %c0_i32 = arith.constant 0 : i32
    %c0_i32_0 = arith.constant 0 : i32
    %c0_i32_1 = arith.constant 0 : i32
    return %c0_i32, %c0_i32_0 : i32, i32
  }
  func.func @transform_5(%arg0: i32, %arg1: i32) -> (i32, i32, i32, i32) {
    %c0_i32 = arith.constant 0 : i32
    %c0_i32_0 = arith.constant 0 : i32
    %c0_i32_1 = arith.constant 0 : i32
    %c0_i32_2 = arith.constant 0 : i32
    return %arg0, %c0_i32, %c0_i32_0, %c0_i32_1 : i32, i32, i32, i32
  }
}

</mosaic_0001>

<llo_original>
// kernel: self_attention_forward.3
$region0: #{self_attention_forward.3}
  #allocation0 [shape = 'u32[]', space=smem, size = 0x4, offset = 0x4, fixed_abs, tag = 'smem constant byte address 0x4 - core index']
  #allocation1 [shape = 'u32[72,128]{1,0:T(1,128)}', space=vmem, size = 0x9000, scoped, tag = 'internal scratch']
  #allocation2 [shape = 'f32[32,32]{1,0:T(8,128)}', space=vmem, size = 0x4000, scoped, tag = 'scratch operand']
  #allocation3 [shape = 'f32[32,1]{1,0:T(8,128)}', space=vmem, size = 0x4000, scoped, tag = 'scratch operand']
  %s0 = inlined_call_operand.vmem [shape: f32[2,32,256], index: 0, kind: input, shape index: {}]
  %s1 = inlined_call_operand.vmem [shape: f32[2,4,8,8], index: 1, kind: input, shape index: {}]
  %s2 = inlined_call_operand.vmem [shape: f32[32,32], index: 2, kind: input, shape index: {}]
  %s3 = inlined_call_operand.vmem [shape: f32[32,1], index: 3, kind: input, shape index: {}]
  %s4 = inlined_call_operand.vmem [shape: f32[32,32], index: 4, kind: input, shape index: {}]
  %s5 = inlined_call_operand.vmem [shape: f32[32,1], index: 5, kind: input, shape index: {}]
  %s6 = inlined_call_operand.vmem [shape: f32[2,32,256], index: 6, kind: output, shape index: {}]
  %s7 = sld [smem:[#allocation0]]
  $region133: #{self_attention_forward.3} parent=0
    _
  %s9 = ssub.s32 1, %s7
  %s10 = scalar_select 0, %s9, %s7
  $region1: #{self_attention_forward.3} parent=0
    #allocation4 [shape = 'u8[32768]{0}', space=vmem, size = 0x8000, scoped, tag = 'input window, operand 0']
    #allocation5 [shape = 'u8[32768]{0}', space=vmem, size = 0x8000, scoped, tag = 'output window, operand 0']
    loop: start=0, step=1, limit=6
    $region2: #{self_attention_forward.3} parent=1 // loop_pre_header
      _
    $region3: #{self_attention_forward.3} parent=1 // loop_header
      %s12 = sphi 0, %s16
      %p13 = scmp.ge.s32.totalorder %s12, 6
      %s19 = sphi 0, %s31
      %s20 = sphi 0, %s27
      %s21 = sphi 0, %s19
      %s22 = sphi 0, %s20
      %s23 = sphi 0, %s21
      %s24 = sphi 0, %s22
      %s36 = sphi 0, %s38
      %s39 = sphi 0, %s36
      %s40 = sphi 0, %s39
      %s56 = sphi 0, %s40
      %s62 = sphi 0, %s64
      %s65 = sphi 0, %s62
      %s66 = sphi 0, %s65
      %s82 = sphi 0, %s66
      %s86 = sphi 0, %s86
      %s88 = sphi 0, %s86
      %s89 = sphi 0, %s88
      %s103 = sphi 0, %s89
      %s107 = sphi 0, %s107
      %s109 = sphi 0, %s107
      %s110 = sphi 0, %s109
      %s124 = sphi 0, %s110
      %s128 = sphi 0, %s128
      %s130 = sphi 0, %s128
      %s131 = sphi 0, %s130
      %s145 = sphi 0, %s131
      %s149 = sphi 0, %s149
      %s151 = sphi 0, %s149
      %s152 = sphi 0, %s151
      %s166 = sphi 0, %s152
      %s174 = sphi 0, %s176
      %s177 = sphi 0, %s174
      %s178 = sphi 0, %s177
      %s194 = sphi 0, %s178
    $region4: #{self_attention_forward.3} parent=1 // loop_header_branch
      %15 = sbr.rel (%p13) target = $region8
    $region5: #{self_attention_forward.3} parent=1 // loop_body
      %s17 = ssub.s32 %s12, 1
      %s18 = ssub.s32 %s12, 2
      %s25 = sadd.s32 1, %s20
      %p26 = scmp.ge.s32.totalorder %s25, 2
      %s27 = scalar_select %p26, 0, %s25
      %s28 = sadd.s32 1, %s19
      %s29 = scalar_select %p26, %s28, %s19
      %p30 = scmp.ge.s32.totalorder %s29, 2
      %s31 = scalar_select %p30, 0, %s29
      %s32 = ssub.s32 %s19, %s31
      %s33 = ssub.s32 %s20, %s27
      %s34 = sor.u32 %s32, %s33
      %p35 = scmp.eq.s32.totalorder %s34, 0
      %s37 = sadd.s32 %s36, 1
      %s38 = scalar_select %p35, %s36, %s37
      %p41 = pneg %p35
      %p42 = scmp.eq.s32.totalorder %s12, 3
      %p43 = por %p41, %p42
      %p44 = scmp.ne.s32.totalorder %s36, %s39
      %p45 = scmp.eq.s32.totalorder %s12, 0
      %p46 = por %p44, %p45
      %p47 = scmp.ne.s32.totalorder %s36, %s39
      %p48 = scmp.eq.s32.totalorder %s17, 3
      %p49 = por %p47, %p48
      %p50 = scmp.ne.s32.totalorder %s39, %s40
      %p51 = scmp.eq.s32.totalorder %s17, 0
      %p52 = por %p50, %p51
      %p53 = scmp.ne.s32.totalorder %s39, %s40
      %p54 = scmp.eq.s32.totalorder %s18, 3
      %p55 = por %p53, %p54
      %p57 = scmp.ne.s32.totalorder %s40, %s56
      %p58 = scmp.eq.s32.totalorder %s18, 0
      %p59 = por %p57, %p58
      %s60 = ssub.s32 %s19, %s31
      %p61 = scmp.eq.s32.totalorder %s60, 0
      %s63 = sadd.s32 %s62, 1
      %s64 = scalar_select %p61, %s62, %s63
      %p67 = pneg %p61
      %p68 = scmp.eq.s32.totalorder %s12, 3
      %p69 = por %p67, %p68
      %p70 = scmp.ne.s32.totalorder %s62, %s65
      %p71 = scmp.eq.s32.totalorder %s12, 0
      %p72 = por %p70, %p71
      %p73 = scmp.ne.s32.totalorder %s62, %s65
      %p74 = scmp.eq.s32.totalorder %s17, 3
      %p75 = por %p73, %p74
      %p76 = scmp.ne.s32.totalorder %s65, %s66
      %p77 = scmp.eq.s32.totalorder %s17, 0
      %p78 = por %p76, %p77
      %p79 = scmp.ne.s32.totalorder %s65, %s66
      %p80 = scmp.eq.s32.totalorder %s18, 3
      %p81 = por %p79, %p80
      %p83 = scmp.ne.s32.totalorder %s66, %s82
      %p84 = scmp.eq.s32.totalorder %s18, 0
      %p85 = por %p83, %p84
      %s87 = sadd.s32 %s86, 1
      %p90 = scmp.eq.s32.totalorder %s12, 3
      %p91 = scmp.ne.s32.totalorder %s86, %s88
      %p92 = scmp.eq.s32.totalorder %s12, 0
      %p93 = por %p91, %p92
      %p94 = scmp.ne.s32.totalorder %s86, %s88
      %p95 = scmp.eq.s32.totalorder %s17, 3
      %p96 = por %p94, %p95
      %p97 = scmp.ne.s32.totalorder %s88, %s89
      %p98 = scmp.eq.s32.totalorder %s17, 0
      %p99 = por %p97, %p98
      %p100 = scmp.ne.s32.totalorder %s88, %s89
      %p101 = scmp.eq.s32.totalorder %s18, 3
      %p102 = por %p100, %p101
      %p104 = scmp.ne.s32.totalorder %s89, %s103
      %p105 = scmp.eq.s32.totalorder %s18, 0
      %p106 = por %p104, %p105
      %s108 = sadd.s32 %s107, 1
      %p111 = scmp.eq.s32.totalorder %s12, 3
      %p112 = scmp.ne.s32.totalorder %s107, %s109
      %p113 = scmp.eq.s32.totalorder %s12, 0
      %p114 = por %p112, %p113
      %p115 = scmp.ne.s32.totalorder %s107, %s109
      %p116 = scmp.eq.s32.totalorder %s17, 3
      %p117 = por %p115, %p116
      %p118 = scmp.ne.s32.totalorder %s109, %s110
      %p119 = scmp.eq.s32.totalorder %s17, 0
      %p120 = por %p118, %p119
      %p121 = scmp.ne.s32.totalorder %s109, %s110
      %p122 = scmp.eq.s32.totalorder %s18, 3
      %p123 = por %p121, %p122
      %p125 = scmp.ne.s32.totalorder %s110, %s124
      %p126 = scmp.eq.s32.totalorder %s18, 0
      %p127 = por %p125, %p126
      %s129 = sadd.s32 %s128, 1
      %p132 = scmp.eq.s32.totalorder %s12, 3
      %p133 = scmp.ne.s32.totalorder %s128, %s130
      %p134 = scmp.eq.s32.totalorder %s12, 0
      %p135 = por %p133, %p134
      %p136 = scmp.ne.s32.totalorder %s128, %s130
      %p137 = scmp.eq.s32.totalorder %s17, 3
      %p138 = por %p136, %p137
      %p139 = scmp.ne.s32.totalorder %s130, %s131
      %p140 = scmp.eq.s32.totalorder %s17, 0
      %p141 = por %p139, %p140
      %p142 = scmp.ne.s32.totalorder %s130, %s131
      %p143 = scmp.eq.s32.totalorder %s18, 3
      %p144 = por %p142, %p143
      %p146 = scmp.ne.s32.totalorder %s131, %s145
      %p147 = scmp.eq.s32.totalorder %s18, 0
      %p148 = por %p146, %p147
      %s150 = sadd.s32 %s149, 1
      %p153 = scmp.eq.s32.totalorder %s12, 3
      %p154 = scmp.ne.s32.totalorder %s149, %s151
      %p155 = scmp.eq.s32.totalorder %s12, 0
      %p156 = por %p154, %p155
      %p157 = scmp.ne.s32.totalorder %s149, %s151
      %p158 = scmp.eq.s32.totalorder %s17, 3
      %p159 = por %p157, %p158
      %p160 = scmp.ne.s32.totalorder %s151, %s152
      %p161 = scmp.eq.s32.totalorder %s17, 0
      %p162 = por %p160, %p161
      %p163 = scmp.ne.s32.totalorder %s151, %s152
      %p164 = scmp.eq.s32.totalorder %s18, 3
      %p165 = por %p163, %p164
      %p167 = scmp.ne.s32.totalorder %s152, %s166
      %p168 = scmp.eq.s32.totalorder %s18, 0
      %p169 = por %p167, %p168
      %s170 = ssub.s32 %s19, %s31
      %s171 = ssub.s32 %s20, %s27
      %s172 = sor.u32 %s170, %s171
      %p173 = scmp.eq.s32.totalorder %s172, 0
      %s175 = sadd.s32 %s174, 1
      %s176 = scalar_select %p173, %s174, %s175
      %p179 = pneg %p173
      %p180 = scmp.eq.s32.totalorder %s12, 3
      %p181 = por %p179, %p180
      %p182 = scmp.ne.s32.totalorder %s174, %s177
      %p183 = scmp.eq.s32.totalorder %s12, 0
      %p184 = por %p182, %p183
      %p185 = scmp.ne.s32.totalorder %s174, %s177
      %p186 = scmp.eq.s32.totalorder %s17, 3
      %p187 = por %p185, %p186
      %p188 = scmp.ne.s32.totalorder %s177, %s178
      %p189 = scmp.eq.s32.totalorder %s17, 0
      %p190 = por %p188, %p189
      %p191 = scmp.ne.s32.totalorder %s177, %s178
      %p192 = scmp.eq.s32.totalorder %s18, 3
      %p193 = por %p191, %p192
      %p195 = scmp.ne.s32.totalorder %s178, %s194
      %p196 = scmp.eq.s32.totalorder %s18, 0
      %p197 = por %p195, %p196
      %p198 = scmp.le.s32.totalorder 1, %s12
      %p199 = scmp.lt.s32.totalorder %s12, 5
      %p200 = pnand %p198, %p199
      %p201 = pneg %p200
      // Predicated region
      $region9: #{self_attention_forward.3} parent=5 // pred_check
        _
      $region10: #{self_attention_forward.3} parent=5 // pred_check_branch
        %203 = sbr.rel (%p200) target = $region12
      $region11: #{self_attention_forward.3} parent=5 // pred_region
        %s204 = ssub.s32 %s12, 1
        // Predicated region
        $region13: #{self_attention_forward.3} parent=11 // pred_check
          %p205 = pneg %p99
        $region14: #{self_attention_forward.3} parent=11 // pred_check_branch
          %207 = sbr.rel (%p205) target = $region16
        $region15: #{self_attention_forward.3} parent=11 // pred_region
          _
        $region16: #{self_attention_forward.3} parent=11 // pred_fallthru
          _
        // Predicated region
        $region17: #{self_attention_forward.3} parent=11 // pred_check
          %p208 = pneg %p120
        $region18: #{self_attention_forward.3} parent=11 // pred_check_branch
          %210 = sbr.rel (%p208) target = $region20
        $region19: #{self_attention_forward.3} parent=11 // pred_region
          _
        $region20: #{self_attention_forward.3} parent=11 // pred_fallthru
          _
        // Predicated region
        $region21: #{self_attention_forward.3} parent=11 // pred_check
          %p211 = pneg %p141
        $region22: #{self_attention_forward.3} parent=11 // pred_check_branch
          %213 = sbr.rel (%p211) target = $region24
        $region23: #{self_attention_forward.3} parent=11 // pred_region
          _
        $region24: #{self_attention_forward.3} parent=11 // pred_fallthru
          _
        // Predicated region
        $region25: #{self_attention_forward.3} parent=11 // pred_check
          %p214 = pneg %p162
        $region26: #{self_attention_forward.3} parent=11 // pred_check_branch
          %216 = sbr.rel (%p214) target = $region28
        $region27: #{self_attention_forward.3} parent=11 // pred_region
          _
        $region28: #{self_attention_forward.3} parent=11 // pred_fallthru
          _
      $region12: #{self_attention_forward.3} parent=5 // pred_fallthru
        _
      %p217 = scmp.lt.s32.totalorder %s12, 4
      // Predicated region
      $region29: #{self_attention_forward.3} parent=5 // pred_check
        %p218 = pneg %p217
      $region30: #{self_attention_forward.3} parent=5 // pred_check_branch
        %220 = sbr.rel (%p218) target = $region32
      $region31: #{self_attention_forward.3} parent=5 // pred_region
        // Predicated region
        $region33: #{self_attention_forward.3} parent=31 // pred_check
          %p221 = pneg %p46
        $region34: #{self_attention_forward.3} parent=31 // pred_check_branch
          %223 = sbr.rel (%p221) target = $region36
        $region35: #{self_attention_forward.3} parent=31 // pred_region
          %s224 = sand.u32 %s36, 1
          %s225 = sand.u32 %s36, 1
          %s226 = smul.addr %s225, 32
          %s227 = scalar_lea.vmem [#allocation4], %s226
          %s228 = smul.addr %s19, 8
          %s229 = sadd.s32 %s20, %s228
          %s230 = smul.addr %s229, 8
          %s231 = scalar_lea.vmem %s0, %s230
          // Predicated region
          $region37: #{self_attention_forward.3} parent=35 // pred_check
            _
          $region38: #{self_attention_forward.3} parent=35 // pred_check_branch
            %233 = sbr.rel (0) target = $region40
          $region39: #{self_attention_forward.3} parent=35 // pred_region
            // Predicated region
            $region41: #{self_attention_forward.3} parent=39 // pred_check
              _
            $region42: #{self_attention_forward.3} parent=39 // pred_check_branch
              %235 = sbr.rel (0) target = $region44
            $region43: #{self_attention_forward.3} parent=39 // pred_region
              // Predicated region
              $region56: #{self_attention_forward.3} parent=43 // pred_check
                _
              $region57: #{self_attention_forward.3} parent=43 // pred_check_branch
                %257 = sbr.rel (0) target = $region59
              $region58: #{self_attention_forward.3} parent=43 // pred_region
                loop: start=0, step=1, limit=1
                $region60: #{self_attention_forward.3} parent=58 // loop_pre_header
                  _
                $region61: #{self_attention_forward.3} parent=58 // loop_header
                  %s259 = sphi 0, %s263
                  %p260 = scmp.ge.s32.totalorder %s259, 1
                  %s264 = sphi %s231, %s231
                  %s265 = sphi %s227, %s227
                $region62: #{self_attention_forward.3} parent=58 // loop_header_branch
                  %262 = sbr.rel (%p260) target = $region66
                $region63: #{self_attention_forward.3} parent=58 // loop_body
                  %v266 = vld [vmem:[%s264] sm:$0xff]
                  %267 = vst [vmem:[%s265] sm:$0xff] %v266
                  %v268 = vld [vmem:[%s264 + $0x10] sm:$0xff]
                  %269 = vst [vmem:[%s265 + $0x8] sm:$0xff] %v268
                  %v270 = vld [vmem:[%s264 + $0x20] sm:$0xff]
                  %271 = vst [vmem:[%s265 + $0x10] sm:$0xff] %v270
                  %v272 = vld [vmem:[%s264 + $0x30] sm:$0xff]
                  %273 = vst [vmem:[%s265 + $0x18] sm:$0xff] %v272
                $region64: #{self_attention_forward.3} parent=58 // loop_footer
                  %s263 = sadd.s32 1, %s259
                $region65: #{self_attention_forward.3} parent=58 // loop_footer_branch
                  %258 = sbr.rel target = $region61
                $region66: #{self_attention_forward.3} parent=58 // loop_exit
                  _
              $region59: #{self_attention_forward.3} parent=43 // pred_fallthru
                _
              // Predicated region
              $region67: #{self_attention_forward.3} parent=43 // pred_check
                _
              $region68: #{self_attention_forward.3} parent=43 // pred_check_branch
                %275 = sbr.rel target = $region70
              $region69: #{self_attention_forward.3} parent=43 // pred_region
                _
              $region70: #{self_attention_forward.3} parent=43 // pred_fallthru
                _
            $region44: #{self_attention_forward.3} parent=39 // pred_fallthru
              _
            // Predicated region
            $region45: #{self_attention_forward.3} parent=39 // pred_check
              _
            $region46: #{self_attention_forward.3} parent=39 // pred_check_branch
              %237 = sbr.rel target = $region48
            $region47: #{self_attention_forward.3} parent=39 // pred_region
              %s239 = ssub.s32 256, 1
              loop: start=0, step=1, limit=1
              $region49: #{self_attention_forward.3} parent=47 // loop_pre_header
                _
              $region50: #{self_attention_forward.3} parent=47 // loop_header
                %s241 = sphi 0, %s245
                %p242 = scmp.ge.s32.totalorder %s241, 1
                %s246 = sphi %s231, %s231
                %s247 = sphi %s227, %s227
              $region51: #{self_attention_forward.3} parent=47 // loop_header_branch
                %244 = sbr.rel (%p242) target = $region55
              $region52: #{self_attention_forward.3} parent=47 // loop_body
                %v248 = vld [vmem:[%s246] sm:%s239]
                %249 = vst [vmem:[%s247] sm:%s239] %v248
                %v250 = vld [vmem:[%s246 + $0x10] sm:%s239]
                %251 = vst [vmem:[%s247 + $0x8] sm:%s239] %v250
                %v252 = vld [vmem:[%s246 + $0x20] sm:%s239]
                %253 = vst [vmem:[%s247 + $0x10] sm:%s239] %v252
                %v254 = vld [vmem:[%s246 + $0x30] sm:%s239]
                %255 = vst [vmem:[%s247 + $0x18] sm:%s239] %v254
              $region53: #{self_attention_forward.3} parent=47 // loop_footer
                %s245 = sadd.s32 1, %s241
              $region54: #{self_attention_forward.3} parent=47 // loop_footer_branch
                %240 = sbr.rel target = $region50
              $region55: #{self_attention_forward.3} parent=47 // loop_exit
                _
            $region48: #{self_attention_forward.3} parent=39 // pred_fallthru
              _
          $region40: #{self_attention_forward.3} parent=35 // pred_fallthru
            _
          %276 = vnop
        $region36: #{self_attention_forward.3} parent=31 // pred_fallthru
          _
        // Predicated region
        $region71: #{self_attention_forward.3} parent=31 // pred_check
          %p277 = pneg %p72
        $region72: #{self_attention_forward.3} parent=31 // pred_check_branch
          %279 = sbr.rel (%p277) target = $region74
        $region73: #{self_attention_forward.3} parent=31 // pred_region
          %p280 = scmp.lt.s32.totalorder %s19, 1
          %s281 = scalar_select %p280, %s19, 1
          %s282 = smul.addr %s281, 4
          %s283 = smul.addr %s282, 8
          %s284 = scalar_lea.vmem %s1, %s283
        $region74: #{self_attention_forward.3} parent=31 // pred_fallthru
          _
      $region32: #{self_attention_forward.3} parent=5 // pred_fallthru
        _
      %p285 = scmp.le.s32.totalorder 1, %s12
      %p286 = scmp.lt.s32.totalorder %s12, 5
      %p287 = pnand %p285, %p286
      %p288 = pneg %p287
      // Predicated region
      $region75: #{self_attention_forward.3} parent=5 // pred_check
        _
      $region76: #{self_attention_forward.3} parent=5 // pred_check_branch
        %290 = sbr.rel (%p287) target = $region78
      $region77: #{self_attention_forward.3} parent=5 // pred_region
        %s291 = ssub.s32 %s12, 1
        %s292 = sand.u32 %s39, 1
        %s293 = sand.u32 %s39, 1
        %s294 = smul.addr %s293, 32
        %s295 = scalar_lea.vmem [#allocation4], %s294
        // Predicated region
        $region79: #{self_attention_forward.3} parent=77 // pred_check
          %p296 = pneg %p52
        $region80: #{self_attention_forward.3} parent=77 // pred_check_branch
          %298 = sbr.rel (%p296) target = $region82
        $region81: #{self_attention_forward.3} parent=77 // pred_region
          _
        $region82: #{self_attention_forward.3} parent=77 // pred_fallthru
          _
        %s299 = sand.u32 %s39, 1
        %s300 = sand.u32 %s39, 1
        %s301 = smul.addr %s300, 32
        %s302 = scalar_lea.vmem [#allocation4], %s301
        %p303 = pneg %p52
        %p304 = pneg %p49
        %p305 = scmp.lt.s32.totalorder %s21, 1
        %s306 = scalar_select %p305, %s21, 1
        %s307 = smul.addr %s306, 4
        %s308 = smul.addr %s307, 8
        %s309 = scalar_lea.vmem %s1, %s308
        %p310 = pneg %p78
        %p311 = pneg %p75
        %p312 = pneg %p99
        %p313 = pneg %p96
        %p314 = pneg %p120
        %p315 = pneg %p117
        %p316 = pneg %p141
        %p317 = pneg %p138
        %p318 = pneg %p162
        %p319 = pneg %p159
        %p320 = pneg %p190
        %p321 = pneg %p187
        %s322 = sand.u32 %s177, 1
        %s323 = sand.u32 %s177, 1
        %s324 = smul.addr %s323, 32
        %s325 = scalar_lea.vmem [#allocation5], %s324
        %p326 = scmp.lt.s32.totalorder %s21, 1
        %s327 = scalar_select %p326, %s21, 1
        %s328 = smul.addr %s327, 4
        %s329 = smul.addr %s328, 8
        %s330 = scalar_lea.vmem %s1, %s329
        %p331 = scmp.eq.s32.totalorder %s22, 0
        // Predicated region
        $region83: #{self_attention_forward.3} parent=77 // pred_check
          %p332 = pneg %p331
        $region84: #{self_attention_forward.3} parent=77 // pred_check_branch
          %334 = sbr.rel (%p332) target = $region86
        $region85: #{self_attention_forward.3} parent=77 // pred_region
          %v335 = vld [vmem:[%s4] sm:$0xff]
          %v336 = vld [vmem:[%s4 + $0x8] sm:$0xff]
          %v337 = vld [vmem:[%s4 + $0x10] sm:$0xff]
          %v338 = vld [vmem:[%s4 + $0x18] sm:$0xff]
          %v339 = vld [vmem:[%s2] sm:$0xff]
          %v340 = vld [vmem:[%s2 + $0x8] sm:$0xff]
          %v341 = vld [vmem:[%s2 + $0x10] sm:$0xff]
          %v342 = vld [vmem:[%s2 + $0x18] sm:$0xff]
          %v343 = vld [vmem:[%s3] sm:$0xff]
          %v344 = vld [vmem:[%s3 + $0x8] sm:$0xff]
          %v345 = vld [vmem:[%s3 + $0x10] sm:$0xff]
          %v346 = vld [vmem:[%s3 + $0x18] sm:$0xff]
          %v347 = vld [vmem:[%s330] sm:$0xff]
          %vm348 = vcmask 64512
          %v350 = vsel %vm348, %v335, 0
          %v353 = vsel %vm348, %v336, 0
          %v356 = vsel %vm348, %v337, 0
          %v359 = vsel %vm348, %v338, 0
          %361 = vmatpush.msra.mxu0 0.0
          %362 = vmatpush.msra.mxu0 0.0
          %363 = vmatpush.msra.mxu0 0.0
          %364 = vmatpush.msra.mxu0 0.0
          %365 = vmatpush.msra.mxu0 0.0
          %366 = vmatpush.msra.mxu0 0.0
          %367 = vmatpush.msra.mxu0 0.0
          %368 = vmatpush.msra.mxu0 0.0
          %369 = vmatpush.msra.mxu0 0.0
          %370 = vmatpush.msra.mxu0 0.0
          %371 = vmatpush.msra.mxu0 0.0
          %372 = vmatpush.msra.mxu0 0.0
          %373 = vmatpush.msra.mxu0 0.0
          %374 = vmatpush.msra.mxu0 0.0
          %375 = vmatpush.msra.mxu0 0.0
          %376 = vmatpush.msra.mxu0 %v347
          %377 = vmatmul.f32.gmra.mxu0 %v350
          %v378 = vpop.f32.mrf.mxu0
          %v379 = vadd.f32 0.0, %v378
          %380 = vmatmul.f32.gmra.mxu0 %v353
          %v381 = vpop.f32.mrf.mxu0
          %v382 = vadd.f32 0.0, %v381
          %383 = vmatmul.f32.gmra.mxu0 %v356
          %v384 = vpop.f32.mrf.mxu0
          %v385 = vadd.f32 0.0, %v384
          %386 = vmatmul.f32.gmra.mxu0 %v359
          %v387 = vpop.f32.mrf.mxu0
          %v388 = vadd.f32 0.0, %v387
          %389 = vdwg.mxu0
          %s390 = scalar_lea.vmem %s330, 8
          %v391 = vld [vmem:[%s390] sm:$0xff]
          %392 = vrot.lane.b32.xlu0 %v335, 120
          %v393 = vpop.permute.xlu0 %392
          %394 = vrot.lane.b32.xlu0 %v336, 120
          %v395 = vpop.permute.xlu0 %394
          %396 = vrot.lane.b32.xlu0 %v337, 120
          %v397 = vpop.permute.xlu0 %396
          %398 = vrot.lane.b32.xlu0 %v338, 120
          %v399 = vpop.permute.xlu0 %398
          %v400 = vsel %vm348, %v393, 0
          %v402 = vsel %vm348, %v395, 0
          %v404 = vsel %vm348, %v397, 0
          %v406 = vsel %vm348, %v399, 0
          %408 = vmatpush.msra.mxu0 0.0
          %409 = vmatpush.msra.mxu0 0.0
          %410 = vmatpush.msra.mxu0 0.0
          %411 = vmatpush.msra.mxu0 0.0
          %412 = vmatpush.msra.mxu0 0.0
          %413 = vmatpush.msra.mxu0 0.0
          %414 = vmatpush.msra.mxu0 0.0
          %415 = vmatpush.msra.mxu0 0.0
          %416 = vmatpush.msra.mxu0 0.0
          %417 = vmatpush.msra.mxu0 0.0
          %418 = vmatpush.msra.mxu0 0.0
          %419 = vmatpush.msra.mxu0 0.0
          %420 = vmatpush.msra.mxu0 0.0
          %421 = vmatpush.msra.mxu0 0.0
          %422 = vmatpush.msra.mxu0 0.0
          %423 = vmatpush.msra.mxu0 %v391
          %424 = vmatmul.f32.gmra.mxu0 %v400
          %v425 = vpop.f32.mrf.mxu0
          %v426 = vadd.f32 0.0, %v425
          %427 = vmatmul.f32.gmra.mxu0 %v402
          %v428 = vpop.f32.mrf.mxu0
          %v429 = vadd.f32 0.0, %v428
          %430 = vmatmul.f32.gmra.mxu0 %v404
          %v431 = vpop.f32.mrf.mxu0
          %v432 = vadd.f32 0.0, %v431
          %433 = vmatmul.f32.gmra.mxu0 %v406
          %v434 = vpop.f32.mrf.mxu0
          %v435 = vadd.f32 0.0, %v434
          %436 = vdwg.mxu0
          %v438 = vsel %vm348, %v426, 0
          %v441 = vsel %vm348, %v429, 0
          %v444 = vsel %vm348, %v432, 0
          %v447 = vsel %vm348, %v435, 0
          %449 = vmatpush.msra.mxu0 0.0
          %450 = vmatpush.msra.mxu0 0.0
          %451 = vmatpush.msra.mxu0 0.0
          %452 = vmatpush.msra.mxu0 0.0
          %453 = vmatpush.msra.mxu0 0.0
          %454 = vmatpush.msra.mxu0 0.0
          %455 = vmatpush.msra.mxu0 0.0
          %456 = vmatpush.msra.mxu0 0.0
          %457 = vmatpush.msra.mxu0 0.0
          %458 = vmatpush.msra.mxu0 0.0
          %459 = vmatpush.msra.mxu0 0.0
          %460 = vmatpush.msra.mxu0 0.0
          %461 = vmatpush.msra.mxu0 0.0
          %462 = vmatpush.msra.mxu0 0.0
          %463 = vmatpush.msra.mxu0 0.0
          %464 = vmatpush.msra.mxu0 %v340
          %465 = vmatmul.f32.gmra.mxu0 %v438
          %v466 = vpop.f32.mrf.mxu0
          %v467 = vadd.f32 0.0, %v466
          %468 = vmatmul.f32.gmra.mxu0 %v441
          %v469 = vpop.f32.mrf.mxu0
          %v470 = vadd.f32 0.0, %v469
          %471 = vmatmul.f32.gmra.mxu0 %v444
          %v472 = vpop.f32.mrf.mxu0
          %v473 = vadd.f32 0.0, %v472
          %474 = vmatmul.f32.gmra.mxu0 %v447
          %v475 = vpop.f32.mrf.mxu0
          %v476 = vadd.f32 0.0, %v475
          %477 = vdwg.mxu0
          %v479 = vsel %vm348, %v379, 0
          %v482 = vsel %vm348, %v382, 0
          %v485 = vsel %vm348, %v385, 0
          %v488 = vsel %vm348, %v388, 0
          %490 = vmatpush.msra.mxu0 0.0
          %491 = vmatpush.msra.mxu0 0.0
          %492 = vmatpush.msra.mxu0 0.0
          %493 = vmatpush.msra.mxu0 0.0
          %494 = vmatpush.msra.mxu0 0.0
          %495 = vmatpush.msra.mxu0 0.0
          %496 = vmatpush.msra.mxu0 0.0
          %497 = vmatpush.msra.mxu0 0.0
          %498 = vmatpush.msra.mxu0 0.0
          %499 = vmatpush.msra.mxu0 0.0
          %500 = vmatpush.msra.mxu0 0.0
          %501 = vmatpush.msra.mxu0 0.0
          %502 = vmatpush.msra.mxu0 0.0
          %503 = vmatpush.msra.mxu0 0.0
          %504 = vmatpush.msra.mxu0 0.0
          %505 = vmatpush.msra.mxu0 %v339
          %506 = vmatmul.f32.gmra.mxu0 %v479
          %v507 = vpop.f32.mrf.mxu0
          %v508 = vadd.f32 %v467, %v507
          %509 = vmatmul.f32.gmra.mxu0 %v482
          %v510 = vpop.f32.mrf.mxu0
          %v511 = vadd.f32 %v470, %v510
          %512 = vmatmul.f32.gmra.mxu0 %v485
          %v513 = vpop.f32.mrf.mxu0
          %v514 = vadd.f32 %v473, %v513
          %515 = vmatmul.f32.gmra.mxu0 %v488
          %v516 = vpop.f32.mrf.mxu0
          %v517 = vadd.f32 %v476, %v516
          %518 = vdwg.mxu0
          %519 = vmatpush.msra.mxu0 0.0
          %520 = vmatpush.msra.mxu0 0.0
          %521 = vmatpush.msra.mxu0 0.0
          %522 = vmatpush.msra.mxu0 0.0
          %523 = vmatpush.msra.mxu0 0.0
          %524 = vmatpush.msra.mxu0 0.0
          %525 = vmatpush.msra.mxu0 0.0
          %526 = vmatpush.msra.mxu0 0.0
          %527 = vmatpush.msra.mxu0 0.0
          %528 = vmatpush.msra.mxu0 0.0
          %529 = vmatpush.msra.mxu0 0.0
          %530 = vmatpush.msra.mxu0 0.0
          %531 = vmatpush.msra.mxu0 0.0
          %532 = vmatpush.msra.mxu0 0.0
          %533 = vmatpush.msra.mxu0 0.0
          %534 = vmatpush.msra.mxu0 %v344
          %535 = vmatmul.f32.gmra.mxu0 %v438
          %v536 = vpop.f32.mrf.mxu0
          %v537 = vadd.f32 0.0, %v536
          %538 = vmatmul.f32.gmra.mxu0 %v441
          %v539 = vpop.f32.mrf.mxu0
          %v540 = vadd.f32 0.0, %v539
          %541 = vmatmul.f32.gmra.mxu0 %v444
          %v542 = vpop.f32.mrf.mxu0
          %v543 = vadd.f32 0.0, %v542
          %544 = vmatmul.f32.gmra.mxu0 %v447
          %v545 = vpop.f32.mrf.mxu0
          %v546 = vadd.f32 0.0, %v545
          %547 = vdwg.mxu0
          %548 = vmatpush.msra.mxu0 0.0
          %549 = vmatpush.msra.mxu0 0.0
          %550 = vmatpush.msra.mxu0 0.0
          %551 = vmatpush.msra.mxu0 0.0
          %552 = vmatpush.msra.mxu0 0.0
          %553 = vmatpush.msra.mxu0 0.0
          %554 = vmatpush.msra.mxu0 0.0
          %555 = vmatpush.msra.mxu0 0.0
          %556 = vmatpush.msra.mxu0 0.0
          %557 = vmatpush.msra.mxu0 0.0
          %558 = vmatpush.msra.mxu0 0.0
          %559 = vmatpush.msra.mxu0 0.0
          %560 = vmatpush.msra.mxu0 0.0
          %561 = vmatpush.msra.mxu0 0.0
          %562 = vmatpush.msra.mxu0 0.0
          %563 = vmatpush.msra.mxu0 %v343
          %564 = vmatmul.f32.gmra.mxu0 %v479
          %v565 = vpop.f32.mrf.mxu0
          %v566 = vadd.f32 %v537, %v565
          %567 = vmatmul.f32.gmra.mxu0 %v482
          %v568 = vpop.f32.mrf.mxu0
          %v569 = vadd.f32 %v540, %v568
          %570 = vmatmul.f32.gmra.mxu0 %v485
          %v571 = vpop.f32.mrf.mxu0
          %v572 = vadd.f32 %v543, %v571
          %573 = vmatmul.f32.gmra.mxu0 %v488
          %v574 = vpop.f32.mrf.mxu0
          %v575 = vadd.f32 %v546, %v574
          %576 = vdwg.mxu0
          %s577 = scalar_lea.vmem %s330, 16
          %v578 = vld [vmem:[%s577] sm:$0xff]
          %579 = vrot.lane.b32.xlu0 %v335, 112
          %v580 = vpop.permute.xlu0 %579
          %581 = vrot.lane.b32.xlu0 %v336, 112
          %v582 = vpop.permute.xlu0 %581
          %583 = vrot.lane.b32.xlu0 %v337, 112
          %v584 = vpop.permute.xlu0 %583
          %585 = vrot.lane.b32.xlu0 %v338, 112
          %v586 = vpop.permute.xlu0 %585
          %v587 = vsel %vm348, %v580, 0
          %v589 = vsel %vm348, %v582, 0
          %v591 = vsel %vm348, %v584, 0
          %v593 = vsel %vm348, %v586, 0
          %595 = vmatpush.msra.mxu0 0.0
          %596 = vmatpush.msra.mxu0 0.0
          %597 = vmatpush.msra.mxu0 0.0
          %598 = vmatpush.msra.mxu0 0.0
          %599 = vmatpush.msra.mxu0 0.0
          %600 = vmatpush.msra.mxu0 0.0
          %601 = vmatpush.msra.mxu0 0.0
          %602 = vmatpush.msra.mxu0 0.0
          %603 = vmatpush.msra.mxu0 0.0
          %604 = vmatpush.msra.mxu0 0.0
          %605 = vmatpush.msra.mxu0 0.0
          %606 = vmatpush.msra.mxu0 0.0
          %607 = vmatpush.msra.mxu0 0.0
          %608 = vmatpush.msra.mxu0 0.0
          %609 = vmatpush.msra.mxu0 0.0
          %610 = vmatpush.msra.mxu0 %v578
          %611 = vmatmul.f32.gmra.mxu0 %v587
          %v612 = vpop.f32.mrf.mxu0
          %v613 = vadd.f32 0.0, %v612
          %614 = vmatmul.f32.gmra.mxu0 %v589
          %v615 = vpop.f32.mrf.mxu0
          %v616 = vadd.f32 0.0, %v615
          %617 = vmatmul.f32.gmra.mxu0 %v591
          %v618 = vpop.f32.mrf.mxu0
          %v619 = vadd.f32 0.0, %v618
          %620 = vmatmul.f32.gmra.mxu0 %v593
          %v621 = vpop.f32.mrf.mxu0
          %v622 = vadd.f32 0.0, %v621
          %623 = vdwg.mxu0
          %v625 = vsel %vm348, %v613, 0
          %v628 = vsel %vm348, %v616, 0
          %v631 = vsel %vm348, %v619, 0
          %v634 = vsel %vm348, %v622, 0
          %636 = vmatpush.msra.mxu0 0.0
          %637 = vmatpush.msra.mxu0 0.0
          %638 = vmatpush.msra.mxu0 0.0
          %639 = vmatpush.msra.mxu0 0.0
          %640 = vmatpush.msra.mxu0 0.0
          %641 = vmatpush.msra.mxu0 0.0
          %642 = vmatpush.msra.mxu0 0.0
          %643 = vmatpush.msra.mxu0 0.0
          %644 = vmatpush.msra.mxu0 0.0
          %645 = vmatpush.msra.mxu0 0.0
          %646 = vmatpush.msra.mxu0 0.0
          %647 = vmatpush.msra.mxu0 0.0
          %648 = vmatpush.msra.mxu0 0.0
          %649 = vmatpush.msra.mxu0 0.0
          %650 = vmatpush.msra.mxu0 0.0
          %651 = vmatpush.msra.mxu0 %v341
          %652 = vmatmul.f32.gmra.mxu0 %v625
          %v653 = vpop.f32.mrf.mxu0
          %v654 = vadd.f32 0.0, %v653
          %655 = vmatmul.f32.gmra.mxu0 %v628
          %v656 = vpop.f32.mrf.mxu0
          %v657 = vadd.f32 0.0, %v656
          %658 = vmatmul.f32.gmra.mxu0 %v631
          %v659 = vpop.f32.mrf.mxu0
          %v660 = vadd.f32 0.0, %v659
          %661 = vmatmul.f32.gmra.mxu0 %v634
          %v662 = vpop.f32.mrf.mxu0
          %v663 = vadd.f32 0.0, %v662
          %664 = vdwg.mxu0
          %v665 = vadd.f32 %v508, %v654
          %v666 = vadd.f32 %v511, %v657
          %v667 = vadd.f32 %v514, %v660
          %v668 = vadd.f32 %v517, %v663
          %669 = vmatpush.msra.mxu0 0.0
          %670 = vmatpush.msra.mxu0 0.0
          %671 = vmatpush.msra.mxu0 0.0
          %672 = vmatpush.msra.mxu0 0.0
          %673 = vmatpush.msra.mxu0 0.0
          %674 = vmatpush.msra.mxu0 0.0
          %675 = vmatpush.msra.mxu0 0.0
          %676 = vmatpush.msra.mxu0 0.0
          %677 = vmatpush.msra.mxu0 0.0
          %678 = vmatpush.msra.mxu0 0.0
          %679 = vmatpush.msra.mxu0 0.0
          %680 = vmatpush.msra.mxu0 0.0
          %681 = vmatpush.msra.mxu0 0.0
          %682 = vmatpush.msra.mxu0 0.0
          %683 = vmatpush.msra.mxu0 0.0
          %684 = vmatpush.msra.mxu0 %v345
          %685 = vmatmul.f32.gmra.mxu0 %v625
          %v686 = vpop.f32.mrf.mxu0
          %v687 = vadd.f32 0.0, %v686
          %688 = vmatmul.f32.gmra.mxu0 %v628
          %v689 = vpop.f32.mrf.mxu0
          %v690 = vadd.f32 0.0, %v689
          %691 = vmatmul.f32.gmra.mxu0 %v631
          %v692 = vpop.f32.mrf.mxu0
          %v693 = vadd.f32 0.0, %v692
          %694 = vmatmul.f32.gmra.mxu0 %v634
          %v695 = vpop.f32.mrf.mxu0
          %v696 = vadd.f32 0.0, %v695
          %697 = vdwg.mxu0
          %v698 = vadd.f32 %v566, %v687
          %v699 = vadd.f32 %v569, %v690
          %v700 = vadd.f32 %v572, %v693
          %v701 = vadd.f32 %v575, %v696
          %s702 = scalar_lea.vmem %s330, 24
          %v703 = vld [vmem:[%s702] sm:$0xff]
          %704 = vrot.lane.b32.xlu0 %v335, 104
          %v705 = vpop.permute.xlu0 %704
          %706 = vrot.lane.b32.xlu0 %v336, 104
          %v707 = vpop.permute.xlu0 %706
          %708 = vrot.lane.b32.xlu0 %v337, 104
          %v709 = vpop.permute.xlu0 %708
          %710 = vrot.lane.b32.xlu0 %v338, 104
          %v711 = vpop.permute.xlu0 %710
          %v712 = vsel %vm348, %v705, 0
          %v714 = vsel %vm348, %v707, 0
          %v716 = vsel %vm348, %v709, 0
          %v718 = vsel %vm348, %v711, 0
          %720 = vmatpush.msra.mxu0 0.0
          %721 = vmatpush.msra.mxu0 0.0
          %722 = vmatpush.msra.mxu0 0.0
          %723 = vmatpush.msra.mxu0 0.0
          %724 = vmatpush.msra.mxu0 0.0
          %725 = vmatpush.msra.mxu0 0.0
          %726 = vmatpush.msra.mxu0 0.0
          %727 = vmatpush.msra.mxu0 0.0
          %728 = vmatpush.msra.mxu0 0.0
          %729 = vmatpush.msra.mxu0 0.0
          %730 = vmatpush.msra.mxu0 0.0
          %731 = vmatpush.msra.mxu0 0.0
          %732 = vmatpush.msra.mxu0 0.0
          %733 = vmatpush.msra.mxu0 0.0
          %734 = vmatpush.msra.mxu0 0.0
          %735 = vmatpush.msra.mxu0 %v703
          %736 = vmatmul.f32.gmra.mxu0 %v712
          %v737 = vpop.f32.mrf.mxu0
          %v738 = vadd.f32 0.0, %v737
          %739 = vmatmul.f32.gmra.mxu0 %v714
          %v740 = vpop.f32.mrf.mxu0
          %v741 = vadd.f32 0.0, %v740
          %742 = vmatmul.f32.gmra.mxu0 %v716
          %v743 = vpop.f32.mrf.mxu0
          %v744 = vadd.f32 0.0, %v743
          %745 = vmatmul.f32.gmra.mxu0 %v718
          %v746 = vpop.f32.mrf.mxu0
          %v747 = vadd.f32 0.0, %v746
          %748 = vdwg.mxu0
          %v750 = vsel %vm348, %v738, 0
          %v753 = vsel %vm348, %v741, 0
          %v756 = vsel %vm348, %v744, 0
          %v759 = vsel %vm348, %v747, 0
          %761 = vmatpush.msra.mxu0 0.0
          %762 = vmatpush.msra.mxu0 0.0
          %763 = vmatpush.msra.mxu0 0.0
          %764 = vmatpush.msra.mxu0 0.0
          %765 = vmatpush.msra.mxu0 0.0
          %766 = vmatpush.msra.mxu0 0.0
          %767 = vmatpush.msra.mxu0 0.0
          %768 = vmatpush.msra.mxu0 0.0
          %769 = vmatpush.msra.mxu0 0.0
          %770 = vmatpush.msra.mxu0 0.0
          %771 = vmatpush.msra.mxu0 0.0
          %772 = vmatpush.msra.mxu0 0.0
          %773 = vmatpush.msra.mxu0 0.0
          %774 = vmatpush.msra.mxu0 0.0
          %775 = vmatpush.msra.mxu0 0.0
          %776 = vmatpush.msra.mxu0 %v342
          %777 = vmatmul.f32.gmra.mxu0 %v750
          %v778 = vpop.f32.mrf.mxu0
          %v779 = vadd.f32 0.0, %v778
          %780 = vmatmul.f32.gmra.mxu0 %v753
          %v781 = vpop.f32.mrf.mxu0
          %v782 = vadd.f32 0.0, %v781
          %783 = vmatmul.f32.gmra.mxu0 %v756
          %v784 = vpop.f32.mrf.mxu0
          %v785 = vadd.f32 0.0, %v784
          %786 = vmatmul.f32.gmra.mxu0 %v759
          %v787 = vpop.f32.mrf.mxu0
          %v788 = vadd.f32 0.0, %v787
          %789 = vdwg.mxu0
          %v790 = vadd.f32 %v665, %v779
          %v791 = vadd.f32 %v666, %v782
          %v792 = vadd.f32 %v667, %v785
          %v793 = vadd.f32 %v668, %v788
          %794 = vmatpush.msra.mxu0 0.0
          %795 = vmatpush.msra.mxu0 0.0
          %796 = vmatpush.msra.mxu0 0.0
          %797 = vmatpush.msra.mxu0 0.0
          %798 = vmatpush.msra.mxu0 0.0
          %799 = vmatpush.msra.mxu0 0.0
          %800 = vmatpush.msra.mxu0 0.0
          %801 = vmatpush.msra.mxu0 0.0
          %802 = vmatpush.msra.mxu0 0.0
          %803 = vmatpush.msra.mxu0 0.0
          %804 = vmatpush.msra.mxu0 0.0
          %805 = vmatpush.msra.mxu0 0.0
          %806 = vmatpush.msra.mxu0 0.0
          %807 = vmatpush.msra.mxu0 0.0
          %808 = vmatpush.msra.mxu0 0.0
          %809 = vmatpush.msra.mxu0 %v346
          %810 = vmatmul.f32.gmra.mxu0 %v750
          %v811 = vpop.f32.mrf.mxu0
          %v812 = vadd.f32 0.0, %v811
          %813 = vmatmul.f32.gmra.mxu0 %v753
          %v814 = vpop.f32.mrf.mxu0
          %v815 = vadd.f32 0.0, %v814
          %816 = vmatmul.f32.gmra.mxu0 %v756
          %v817 = vpop.f32.mrf.mxu0
          %v818 = vadd.f32 0.0, %v817
          %819 = vmatmul.f32.gmra.mxu0 %v759
          %v820 = vpop.f32.mrf.mxu0
          %v821 = vadd.f32 0.0, %v820
          %822 = vdwg.mxu0
          %v823 = vadd.f32 %v698, %v812
          %v824 = vadd.f32 %v699, %v815
          %v825 = vadd.f32 %v700, %v818
          %v826 = vadd.f32 %v701, %v821
          %vm827 = vcmask 261120
          %828 = vst.msk [vmem:[#allocation2] sm:$0xff] %vm827, %v790
          %829 = vst.msk [vmem:[#allocation2 + $0x8] sm:$0xff] %vm827, %v791
          %830 = vst.msk [vmem:[#allocation2 + $0x10] sm:$0xff] %vm827, %v792
          %831 = vst.msk [vmem:[#allocation2 + $0x18] sm:$0xff] %vm827, %v793
          %v832 = vld [vmem:[%s5] sm:$0xff]
          %v833 = vld [vmem:[%s5 + $0x8] sm:$0xff]
          %v834 = vld [vmem:[%s5 + $0x10] sm:$0xff]
          %v835 = vld [vmem:[%s5 + $0x18] sm:$0xff]
          %v836 = vadd.f32 %v823, %v832
          %v837 = vadd.f32 %v824, %v833
          %v838 = vadd.f32 %v825, %v834
          %v839 = vadd.f32 %v826, %v835
          %vm840 = vcmask 7168
          %841 = vst.msk [vmem:[#allocation3] sm:$0xff] %vm840, %v836
          %842 = vst.msk [vmem:[#allocation3 + $0x8] sm:$0xff] %vm840, %v837
          %843 = vst.msk [vmem:[#allocation3 + $0x10] sm:$0xff] %vm840, %v838
          %844 = vst.msk [vmem:[#allocation3 + $0x18] sm:$0xff] %vm840, %v839
        $region86: #{self_attention_forward.3} parent=77 // pred_fallthru
          _
        %v845 = vld [vmem:[#allocation2] sm:$0xff]
        %v846 = vld [vmem:[#allocation2 + $0x8] sm:$0xff]
        %v847 = vld [vmem:[#allocation2 + $0x10] sm:$0xff]
        %v848 = vld [vmem:[#allocation2 + $0x18] sm:$0xff]
        %v849 = vld [vmem:[%s295] sm:$0xff]
        %v850 = vld [vmem:[%s295 + $0x8] sm:$0xff]
        %v851 = vld [vmem:[%s295 + $0x10] sm:$0xff]
        %v852 = vld [vmem:[%s295 + $0x18] sm:$0xff]
        %v853 = vld [vmem:[#allocation3] sm:$0xff]
        %v854 = vld [vmem:[#allocation3 + $0x8] sm:$0xff]
        %v855 = vld [vmem:[#allocation3 + $0x10] sm:$0xff]
        %v856 = vld [vmem:[#allocation3 + $0x18] sm:$0xff]
        %858 = vset.pattern.permute.xlu0 0
        %859 = vperm.xlu0 %858, %v853
        %v860 = vpop.permute.xlu0 %859
        %863 = vset.pattern.permute.xlu0 0
        %864 = vperm.xlu0 %863, %v854
        %v865 = vpop.permute.xlu0 %864
        %868 = vset.pattern.permute.xlu0 0
        %869 = vperm.xlu0 %868, %v855
        %v870 = vpop.permute.xlu0 %869
        %873 = vset.pattern.permute.xlu0 0
        %874 = vperm.xlu0 %873, %v856
        %v875 = vpop.permute.xlu0 %874
        %vm877 = vcmask 261120
        %v879 = vsel %vm877, %v845, 0
        %v882 = vsel %vm877, %v846, 0
        %v885 = vsel %vm877, %v847, 0
        %v888 = vsel %vm877, %v848, 0
        %890 = vmatpush.msra.mxu0 0.0
        %891 = vmatpush.msra.mxu0 0.0
        %892 = vmatpush.msra.mxu0 0.0
        %893 = vmatpush.msra.mxu0 0.0
        %894 = vmatpush.msra.mxu0 0.0
        %895 = vmatpush.msra.mxu0 0.0
        %896 = vmatpush.msra.mxu0 0.0
        %897 = vmatpush.msra.mxu0 0.0
        %898 = vmatpush.msra.mxu0 0.0
        %899 = vmatpush.msra.mxu0 0.0
        %900 = vmatpush.msra.mxu0 0.0
        %901 = vmatpush.msra.mxu0 0.0
        %902 = vmatpush.msra.mxu0 %v852
        %903 = vmatpush.msra.mxu0 %v851
        %904 = vmatpush.msra.mxu0 %v850
        %905 = vmatpush.msra.mxu0 %v849
        %906 = vmatmul.f32.gmra.mxu0 %v879
        %v907 = vpop.f32.mrf.mxu0
        %v908 = vadd.f32 %v860, %v907
        %909 = vmatmul.f32.gmra.mxu0 %v882
        %v910 = vpop.f32.mrf.mxu0
        %v911 = vadd.f32 %v865, %v910
        %912 = vmatmul.f32.gmra.mxu0 %v885
        %v913 = vpop.f32.mrf.mxu0
        %v914 = vadd.f32 %v870, %v913
        %915 = vmatmul.f32.gmra.mxu0 %v888
        %v916 = vpop.f32.mrf.mxu0
        %v917 = vadd.f32 %v875, %v916
        %918 = vdwg.mxu0
        %919 = vst [vmem:[%s325] sm:$0xff] %v908
        %920 = vst [vmem:[%s325 + $0x8] sm:$0xff] %v911
        %921 = vst [vmem:[%s325 + $0x10] sm:$0xff] %v914
        %922 = vst [vmem:[%s325 + $0x18] sm:$0xff] %v917
        %s923 = sand.u32 %s177, 1
        %s924 = sand.u32 %s177, 1
        %s925 = smul.addr %s924, 32
        %s926 = scalar_lea.vmem [#allocation5], %s925
        // Predicated region
        $region87: #{self_attention_forward.3} parent=77 // pred_check
          %p927 = pneg %p187
        $region88: #{self_attention_forward.3} parent=77 // pred_check_branch
          %929 = sbr.rel (%p927) target = $region90
        $region89: #{self_attention_forward.3} parent=77 // pred_region
          %s930 = smul.addr %s21, 8
          %s931 = sadd.s32 %s22, %s930
          %s932 = smul.addr %s931, 8
          %s933 = scalar_lea.vmem %s6, %s932
          // Predicated region
          $region91: #{self_attention_forward.3} parent=89 // pred_check
            _
          $region92: #{self_attention_forward.3} parent=89 // pred_check_branch
            %935 = sbr.rel (0) target = $region94
          $region93: #{self_attention_forward.3} parent=89 // pred_region
            // Predicated region
            $region95: #{self_attention_forward.3} parent=93 // pred_check
              _
            $region96: #{self_attention_forward.3} parent=93 // pred_check_branch
              %937 = sbr.rel (0) target = $region98
            $region97: #{self_attention_forward.3} parent=93 // pred_region
              // Predicated region
              $region110: #{self_attention_forward.3} parent=97 // pred_check
                _
              $region111: #{self_attention_forward.3} parent=97 // pred_check_branch
                %959 = sbr.rel (0) target = $region113
              $region112: #{self_attention_forward.3} parent=97 // pred_region
                loop: start=0, step=1, limit=1
                $region114: #{self_attention_forward.3} parent=112 // loop_pre_header
                  _
                $region115: #{self_attention_forward.3} parent=112 // loop_header
                  %s961 = sphi 0, %s965
                  %p962 = scmp.ge.s32.totalorder %s961, 1
                  %s966 = sphi %s926, %s926
                  %s967 = sphi %s933, %s933
                $region116: #{self_attention_forward.3} parent=112 // loop_header_branch
                  %964 = sbr.rel (%p962) target = $region120
                $region117: #{self_attention_forward.3} parent=112 // loop_body
                  %v968 = vld [vmem:[%s966] sm:$0xff]
                  %969 = vst [vmem:[%s967] sm:$0xff] %v968
                  %v970 = vld [vmem:[%s966 + $0x8] sm:$0xff]
                  %971 = vst [vmem:[%s967 + $0x10] sm:$0xff] %v970
                  %v972 = vld [vmem:[%s966 + $0x10] sm:$0xff]
                  %973 = vst [vmem:[%s967 + $0x20] sm:$0xff] %v972
                  %v974 = vld [vmem:[%s966 + $0x18] sm:$0xff]
                  %975 = vst [vmem:[%s967 + $0x30] sm:$0xff] %v974
                $region118: #{self_attention_forward.3} parent=112 // loop_footer
                  %s965 = sadd.s32 1, %s961
                $region119: #{self_attention_forward.3} parent=112 // loop_footer_branch
                  %960 = sbr.rel target = $region115
                $region120: #{self_attention_forward.3} parent=112 // loop_exit
                  _
              $region113: #{self_attention_forward.3} parent=97 // pred_fallthru
                _
              // Predicated region
              $region121: #{self_attention_forward.3} parent=97 // pred_check
                _
              $region122: #{self_attention_forward.3} parent=97 // pred_check_branch
                %977 = sbr.rel target = $region124
              $region123: #{self_attention_forward.3} parent=97 // pred_region
                _
              $region124: #{self_attention_forward.3} parent=97 // pred_fallthru
                _
            $region98: #{self_attention_forward.3} parent=93 // pred_fallthru
              _
            // Predicated region
            $region99: #{self_attention_forward.3} parent=93 // pred_check
              _
            $region100: #{self_attention_forward.3} parent=93 // pred_check_branch
              %939 = sbr.rel target = $region102
            $region101: #{self_attention_forward.3} parent=93 // pred_region
              %s941 = ssub.s32 256, 1
              loop: start=0, step=1, limit=1
              $region103: #{self_attention_forward.3} parent=101 // loop_pre_header
                _
              $region104: #{self_attention_forward.3} parent=101 // loop_header
                %s943 = sphi 0, %s947
                %p944 = scmp.ge.s32.totalorder %s943, 1
                %s948 = sphi %s926, %s926
                %s949 = sphi %s933, %s933
              $region105: #{self_attention_forward.3} parent=101 // loop_header_branch
                %946 = sbr.rel (%p944) target = $region109
              $region106: #{self_attention_forward.3} parent=101 // loop_body
                %v950 = vld [vmem:[%s948] sm:%s941]
                %951 = vst [vmem:[%s949] sm:%s941] %v950
                %v952 = vld [vmem:[%s948 + $0x8] sm:%s941]
                %953 = vst [vmem:[%s949 + $0x10] sm:%s941] %v952
                %v954 = vld [vmem:[%s948 + $0x10] sm:%s941]
                %955 = vst [vmem:[%s949 + $0x20] sm:%s941] %v954
                %v956 = vld [vmem:[%s948 + $0x18] sm:%s941]
                %957 = vst [vmem:[%s949 + $0x30] sm:%s941] %v956
              $region107: #{self_attention_forward.3} parent=101 // loop_footer
                %s947 = sadd.s32 1, %s943
              $region108: #{self_attention_forward.3} parent=101 // loop_footer_branch
                %942 = sbr.rel target = $region104
              $region109: #{self_attention_forward.3} parent=101 // loop_exit
                _
            $region102: #{self_attention_forward.3} parent=93 // pred_fallthru
              _
          $region94: #{self_attention_forward.3} parent=89 // pred_fallthru
            _
          %978 = vnop
        $region90: #{self_attention_forward.3} parent=77 // pred_fallthru
          _
      $region78: #{self_attention_forward.3} parent=5 // pred_fallthru
        _
      %p979 = scmp.le.s32.totalorder 2, %s12
      // Predicated region
      $region125: #{self_attention_forward.3} parent=5 // pred_check
        %p980 = pneg %p979
      $region126: #{self_attention_forward.3} parent=5 // pred_check_branch
        %982 = sbr.rel (%p980) target = $region128
      $region127: #{self_attention_forward.3} parent=5 // pred_region
        %s983 = ssub.s32 %s12, 2
        // Predicated region
        $region129: #{self_attention_forward.3} parent=127 // pred_check
          %p984 = pneg %p193
        $region130: #{self_attention_forward.3} parent=127 // pred_check_branch
          %986 = sbr.rel (%p984) target = $region132
        $region131: #{self_attention_forward.3} parent=127 // pred_region
          %s987 = sand.u32 %s178, 1
          %s988 = sand.u32 %s178, 1
          %s989 = smul.addr %s988, 32
          %s990 = scalar_lea.vmem [#allocation5], %s989
        $region132: #{self_attention_forward.3} parent=127 // pred_fallthru
          _
      $region128: #{self_attention_forward.3} parent=5 // pred_fallthru
        _
    $region6: #{self_attention_forward.3} parent=1 // loop_footer
      %s16 = sadd.s32 1, %s12
    $region7: #{self_attention_forward.3} parent=1 // loop_footer_branch
      %11 = sbr.rel target = $region3
    $region8: #{self_attention_forward.3} parent=1 // loop_exit
      _

// kernel: self_attention_forward.2
$region0: #{self_attention_forward.2}
  #allocation0 [shape = 'u32[]', space=smem, size = 0x4, offset = 0x4, fixed_abs, tag = 'smem constant byte address 0x4 - core index']
  #allocation1 [shape = 'u32[72,128]{1,0:T(1,128)}', space=vmem, size = 0x9000, scoped, tag = 'internal scratch']
  #allocation2 [shape = 'f32[4,8,8]{2,1,0:T(8,128)}', space=vmem, size = 0x4000, scoped, tag = 'scratch operand']
  %s0 = inlined_call_operand.vmem [shape: f32[2,32,256], index: 0, kind: input, shape index: {}]
  %s1 = inlined_call_operand.vmem [shape: f32[32,32], index: 1, kind: input, shape index: {}]
  %s2 = inlined_call_operand.vmem [shape: f32[32,1], index: 2, kind: input, shape index: {}]
  %s3 = inlined_call_operand.vmem [shape: f32[32,32], index: 3, kind: input, shape index: {}]
  %s4 = inlined_call_operand.vmem [shape: f32[32,1], index: 4, kind: input, shape index: {}]
  %s5 = inlined_call_operand.vmem [shape: f32[2,4,8,8], index: 5, kind: output, shape index: {}]
  %s6 = sld [smem:[#allocation0]]
  $region99: #{self_attention_forward.2} parent=0
    _
  %s8 = ssub.s32 1, %s6
  %s9 = scalar_select 0, %s8, %s6
  $region1: #{self_attention_forward.2} parent=0
    #allocation3 [shape = 'u8[32768]{0}', space=vmem, size = 0x8000, scoped, tag = 'input window, operand 0']
    loop: start=0, step=1, limit=6
    $region2: #{self_attention_forward.2} parent=1 // loop_pre_header
      _
    $region3: #{self_attention_forward.2} parent=1 // loop_header
      %s11 = sphi 0, %s15
      %p12 = scmp.ge.s32.totalorder %s11, 6
      %s18 = sphi 0, %s30
      %s19 = sphi 0, %s26
      %s20 = sphi 0, %s18
      %s21 = sphi 0, %s19
      %s22 = sphi 0, %s20
      %s23 = sphi 0, %s21
      %s35 = sphi 0, %s37
      %s38 = sphi 0, %s35
      %s39 = sphi 0, %s38
      %s55 = sphi 0, %s39
      %s59 = sphi 0, %s59
      %s61 = sphi 0, %s59
      %s62 = sphi 0, %s61
      %s76 = sphi 0, %s62
      %s80 = sphi 0, %s80
      %s82 = sphi 0, %s80
      %s83 = sphi 0, %s82
      %s97 = sphi 0, %s83
      %s101 = sphi 0, %s101
      %s103 = sphi 0, %s101
      %s104 = sphi 0, %s103
      %s118 = sphi 0, %s104
      %s122 = sphi 0, %s122
      %s124 = sphi 0, %s122
      %s125 = sphi 0, %s124
      %s139 = sphi 0, %s125
      %s145 = sphi 0, %s147
      %s148 = sphi 0, %s145
      %s149 = sphi 0, %s148
      %s165 = sphi 0, %s149
    $region4: #{self_attention_forward.2} parent=1 // loop_header_branch
      %14 = sbr.rel (%p12) target = $region8
    $region5: #{self_attention_forward.2} parent=1 // loop_body
      %s16 = ssub.s32 %s11, 1
      %s17 = ssub.s32 %s11, 2
      %s24 = sadd.s32 1, %s19
      %p25 = scmp.ge.s32.totalorder %s24, 2
      %s26 = scalar_select %p25, 0, %s24
      %s27 = sadd.s32 1, %s18
      %s28 = scalar_select %p25, %s27, %s18
      %p29 = scmp.ge.s32.totalorder %s28, 2
      %s30 = scalar_select %p29, 0, %s28
      %s31 = ssub.s32 %s18, %s30
      %s32 = ssub.s32 %s19, %s26
      %s33 = sor.u32 %s31, %s32
      %p34 = scmp.eq.s32.totalorder %s33, 0
      %s36 = sadd.s32 %s35, 1
      %s37 = scalar_select %p34, %s35, %s36
      %p40 = pneg %p34
      %p41 = scmp.eq.s32.totalorder %s11, 3
      %p42 = por %p40, %p41
      %p43 = scmp.ne.s32.totalorder %s35, %s38
      %p44 = scmp.eq.s32.totalorder %s11, 0
      %p45 = por %p43, %p44
      %p46 = scmp.ne.s32.totalorder %s35, %s38
      %p47 = scmp.eq.s32.totalorder %s16, 3
      %p48 = por %p46, %p47
      %p49 = scmp.ne.s32.totalorder %s38, %s39
      %p50 = scmp.eq.s32.totalorder %s16, 0
      %p51 = por %p49, %p50
      %p52 = scmp.ne.s32.totalorder %s38, %s39
      %p53 = scmp.eq.s32.totalorder %s17, 3
      %p54 = por %p52, %p53
      %p56 = scmp.ne.s32.totalorder %s39, %s55
      %p57 = scmp.eq.s32.totalorder %s17, 0
      %p58 = por %p56, %p57
      %s60 = sadd.s32 %s59, 1
      %p63 = scmp.eq.s32.totalorder %s11, 3
      %p64 = scmp.ne.s32.totalorder %s59, %s61
      %p65 = scmp.eq.s32.totalorder %s11, 0
      %p66 = por %p64, %p65
      %p67 = scmp.ne.s32.totalorder %s59, %s61
      %p68 = scmp.eq.s32.totalorder %s16, 3
      %p69 = por %p67, %p68
      %p70 = scmp.ne.s32.totalorder %s61, %s62
      %p71 = scmp.eq.s32.totalorder %s16, 0
      %p72 = por %p70, %p71
      %p73 = scmp.ne.s32.totalorder %s61, %s62
      %p74 = scmp.eq.s32.totalorder %s17, 3
      %p75 = por %p73, %p74
      %p77 = scmp.ne.s32.totalorder %s62, %s76
      %p78 = scmp.eq.s32.totalorder %s17, 0
      %p79 = por %p77, %p78
      %s81 = sadd.s32 %s80, 1
      %p84 = scmp.eq.s32.totalorder %s11, 3
      %p85 = scmp.ne.s32.totalorder %s80, %s82
      %p86 = scmp.eq.s32.totalorder %s11, 0
      %p87 = por %p85, %p86
      %p88 = scmp.ne.s32.totalorder %s80, %s82
      %p89 = scmp.eq.s32.totalorder %s16, 3
      %p90 = por %p88, %p89
      %p91 = scmp.ne.s32.totalorder %s82, %s83
      %p92 = scmp.eq.s32.totalorder %s16, 0
      %p93 = por %p91, %p92
      %p94 = scmp.ne.s32.totalorder %s82, %s83
      %p95 = scmp.eq.s32.totalorder %s17, 3
      %p96 = por %p94, %p95
      %p98 = scmp.ne.s32.totalorder %s83, %s97
      %p99 = scmp.eq.s32.totalorder %s17, 0
      %p100 = por %p98, %p99
      %s102 = sadd.s32 %s101, 1
      %p105 = scmp.eq.s32.totalorder %s11, 3
      %p106 = scmp.ne.s32.totalorder %s101, %s103
      %p107 = scmp.eq.s32.totalorder %s11, 0
      %p108 = por %p106, %p107
      %p109 = scmp.ne.s32.totalorder %s101, %s103
      %p110 = scmp.eq.s32.totalorder %s16, 3
      %p111 = por %p109, %p110
      %p112 = scmp.ne.s32.totalorder %s103, %s104
      %p113 = scmp.eq.s32.totalorder %s16, 0
      %p114 = por %p112, %p113
      %p115 = scmp.ne.s32.totalorder %s103, %s104
      %p116 = scmp.eq.s32.totalorder %s17, 3
      %p117 = por %p115, %p116
      %p119 = scmp.ne.s32.totalorder %s104, %s118
      %p120 = scmp.eq.s32.totalorder %s17, 0
      %p121 = por %p119, %p120
      %s123 = sadd.s32 %s122, 1
      %p126 = scmp.eq.s32.totalorder %s11, 3
      %p127 = scmp.ne.s32.totalorder %s122, %s124
      %p128 = scmp.eq.s32.totalorder %s11, 0
      %p129 = por %p127, %p128
      %p130 = scmp.ne.s32.totalorder %s122, %s124
      %p131 = scmp.eq.s32.totalorder %s16, 3
      %p132 = por %p130, %p131
      %p133 = scmp.ne.s32.totalorder %s124, %s125
      %p134 = scmp.eq.s32.totalorder %s16, 0
      %p135 = por %p133, %p134
      %p136 = scmp.ne.s32.totalorder %s124, %s125
      %p137 = scmp.eq.s32.totalorder %s17, 3
      %p138 = por %p136, %p137
      %p140 = scmp.ne.s32.totalorder %s125, %s139
      %p141 = scmp.eq.s32.totalorder %s17, 0
      %p142 = por %p140, %p141
      %s143 = ssub.s32 %s18, %s30
      %p144 = scmp.eq.s32.totalorder %s143, 0
      %s146 = sadd.s32 %s145, 1
      %s147 = scalar_select %p144, %s145, %s146
      %p150 = pneg %p144
      %p151 = scmp.eq.s32.totalorder %s11, 3
      %p152 = por %p150, %p151
      %p153 = scmp.ne.s32.totalorder %s145, %s148
      %p154 = scmp.eq.s32.totalorder %s11, 0
      %p155 = por %p153, %p154
      %p156 = scmp.ne.s32.totalorder %s145, %s148
      %p157 = scmp.eq.s32.totalorder %s16, 3
      %p158 = por %p156, %p157
      %p159 = scmp.ne.s32.totalorder %s148, %s149
      %p160 = scmp.eq.s32.totalorder %s16, 0
      %p161 = por %p159, %p160
      %p162 = scmp.ne.s32.totalorder %s148, %s149
      %p163 = scmp.eq.s32.totalorder %s17, 3
      %p164 = por %p162, %p163
      %p166 = scmp.ne.s32.totalorder %s149, %s165
      %p167 = scmp.eq.s32.totalorder %s17, 0
      %p168 = por %p166, %p167
      %p169 = scmp.le.s32.totalorder 1, %s11
      %p170 = scmp.lt.s32.totalorder %s11, 5
      %p171 = pnand %p169, %p170
      %p172 = pneg %p171
      // Predicated region
      $region9: #{self_attention_forward.2} parent=5 // pred_check
        _
      $region10: #{self_attention_forward.2} parent=5 // pred_check_branch
        %174 = sbr.rel (%p171) target = $region12
      $region11: #{self_attention_forward.2} parent=5 // pred_region
        %s175 = ssub.s32 %s11, 1
        // Predicated region
        $region13: #{self_attention_forward.2} parent=11 // pred_check
          %p176 = pneg %p72
        $region14: #{self_attention_forward.2} parent=11 // pred_check_branch
          %178 = sbr.rel (%p176) target = $region16
        $region15: #{self_attention_forward.2} parent=11 // pred_region
          _
        $region16: #{self_attention_forward.2} parent=11 // pred_fallthru
          _
        // Predicated region
        $region17: #{self_attention_forward.2} parent=11 // pred_check
          %p179 = pneg %p93
        $region18: #{self_attention_forward.2} parent=11 // pred_check_branch
          %181 = sbr.rel (%p179) target = $region20
        $region19: #{self_attention_forward.2} parent=11 // pred_region
          _
        $region20: #{self_attention_forward.2} parent=11 // pred_fallthru
          _
        // Predicated region
        $region21: #{self_attention_forward.2} parent=11 // pred_check
          %p182 = pneg %p114
        $region22: #{self_attention_forward.2} parent=11 // pred_check_branch
          %184 = sbr.rel (%p182) target = $region24
        $region23: #{self_attention_forward.2} parent=11 // pred_region
          _
        $region24: #{self_attention_forward.2} parent=11 // pred_fallthru
          _
        // Predicated region
        $region25: #{self_attention_forward.2} parent=11 // pred_check
          %p185 = pneg %p135
        $region26: #{self_attention_forward.2} parent=11 // pred_check_branch
          %187 = sbr.rel (%p185) target = $region28
        $region27: #{self_attention_forward.2} parent=11 // pred_region
          _
        $region28: #{self_attention_forward.2} parent=11 // pred_fallthru
          _
      $region12: #{self_attention_forward.2} parent=5 // pred_fallthru
        _
      %p188 = scmp.lt.s32.totalorder %s11, 4
      // Predicated region
      $region29: #{self_attention_forward.2} parent=5 // pred_check
        %p189 = pneg %p188
      $region30: #{self_attention_forward.2} parent=5 // pred_check_branch
        %191 = sbr.rel (%p189) target = $region32
      $region31: #{self_attention_forward.2} parent=5 // pred_region
        // Predicated region
        $region33: #{self_attention_forward.2} parent=31 // pred_check
          %p192 = pneg %p45
        $region34: #{self_attention_forward.2} parent=31 // pred_check_branch
          %194 = sbr.rel (%p192) target = $region36
        $region35: #{self_attention_forward.2} parent=31 // pred_region
          %s195 = sand.u32 %s35, 1
          %s196 = sand.u32 %s35, 1
          %s197 = smul.addr %s196, 32
          %s198 = scalar_lea.vmem [#allocation3], %s197
          %s199 = smul.addr %s18, 8
          %s200 = sadd.s32 %s19, %s199
          %s201 = smul.addr %s200, 8
          %s202 = scalar_lea.vmem %s0, %s201
          // Predicated region
          $region37: #{self_attention_forward.2} parent=35 // pred_check
            _
          $region38: #{self_attention_forward.2} parent=35 // pred_check_branch
            %204 = sbr.rel (0) target = $region40
          $region39: #{self_attention_forward.2} parent=35 // pred_region
            // Predicated region
            $region41: #{self_attention_forward.2} parent=39 // pred_check
              _
            $region42: #{self_attention_forward.2} parent=39 // pred_check_branch
              %206 = sbr.rel (0) target = $region44
            $region43: #{self_attention_forward.2} parent=39 // pred_region
              // Predicated region
              $region56: #{self_attention_forward.2} parent=43 // pred_check
                _
              $region57: #{self_attention_forward.2} parent=43 // pred_check_branch
                %228 = sbr.rel (0) target = $region59
              $region58: #{self_attention_forward.2} parent=43 // pred_region
                loop: start=0, step=1, limit=1
                $region60: #{self_attention_forward.2} parent=58 // loop_pre_header
                  _
                $region61: #{self_attention_forward.2} parent=58 // loop_header
                  %s230 = sphi 0, %s234
                  %p231 = scmp.ge.s32.totalorder %s230, 1
                  %s235 = sphi %s202, %s202
                  %s236 = sphi %s198, %s198
                $region62: #{self_attention_forward.2} parent=58 // loop_header_branch
                  %233 = sbr.rel (%p231) target = $region66
                $region63: #{self_attention_forward.2} parent=58 // loop_body
                  %v237 = vld [vmem:[%s235] sm:$0xff]
                  %238 = vst [vmem:[%s236] sm:$0xff] %v237
                  %v239 = vld [vmem:[%s235 + $0x10] sm:$0xff]
                  %240 = vst [vmem:[%s236 + $0x8] sm:$0xff] %v239
                  %v241 = vld [vmem:[%s235 + $0x20] sm:$0xff]
                  %242 = vst [vmem:[%s236 + $0x10] sm:$0xff] %v241
                  %v243 = vld [vmem:[%s235 + $0x30] sm:$0xff]
                  %244 = vst [vmem:[%s236 + $0x18] sm:$0xff] %v243
                $region64: #{self_attention_forward.2} parent=58 // loop_footer
                  %s234 = sadd.s32 1, %s230
                $region65: #{self_attention_forward.2} parent=58 // loop_footer_branch
                  %229 = sbr.rel target = $region61
                $region66: #{self_attention_forward.2} parent=58 // loop_exit
                  _
              $region59: #{self_attention_forward.2} parent=43 // pred_fallthru
                _
              // Predicated region
              $region67: #{self_attention_forward.2} parent=43 // pred_check
                _
              $region68: #{self_attention_forward.2} parent=43 // pred_check_branch
                %246 = sbr.rel target = $region70
              $region69: #{self_attention_forward.2} parent=43 // pred_region
                _
              $region70: #{self_attention_forward.2} parent=43 // pred_fallthru
                _
            $region44: #{self_attention_forward.2} parent=39 // pred_fallthru
              _
            // Predicated region
            $region45: #{self_attention_forward.2} parent=39 // pred_check
              _
            $region46: #{self_attention_forward.2} parent=39 // pred_check_branch
              %208 = sbr.rel target = $region48
            $region47: #{self_attention_forward.2} parent=39 // pred_region
              %s210 = ssub.s32 256, 1
              loop: start=0, step=1, limit=1
              $region49: #{self_attention_forward.2} parent=47 // loop_pre_header
                _
              $region50: #{self_attention_forward.2} parent=47 // loop_header
                %s212 = sphi 0, %s216
                %p213 = scmp.ge.s32.totalorder %s212, 1
                %s217 = sphi %s202, %s202
                %s218 = sphi %s198, %s198
              $region51: #{self_attention_forward.2} parent=47 // loop_header_branch
                %215 = sbr.rel (%p213) target = $region55
              $region52: #{self_attention_forward.2} parent=47 // loop_body
                %v219 = vld [vmem:[%s217] sm:%s210]
                %220 = vst [vmem:[%s218] sm:%s210] %v219
                %v221 = vld [vmem:[%s217 + $0x10] sm:%s210]
                %222 = vst [vmem:[%s218 + $0x8] sm:%s210] %v221
                %v223 = vld [vmem:[%s217 + $0x20] sm:%s210]
                %224 = vst [vmem:[%s218 + $0x10] sm:%s210] %v223
                %v225 = vld [vmem:[%s217 + $0x30] sm:%s210]
                %226 = vst [vmem:[%s218 + $0x18] sm:%s210] %v225
              $region53: #{self_attention_forward.2} parent=47 // loop_footer
                %s216 = sadd.s32 1, %s212
              $region54: #{self_attention_forward.2} parent=47 // loop_footer_branch
                %211 = sbr.rel target = $region50
              $region55: #{self_attention_forward.2} parent=47 // loop_exit
                _
            $region48: #{self_attention_forward.2} parent=39 // pred_fallthru
              _
          $region40: #{self_attention_forward.2} parent=35 // pred_fallthru
            _
          %247 = vnop
        $region36: #{self_attention_forward.2} parent=31 // pred_fallthru
          _
      $region32: #{self_attention_forward.2} parent=5 // pred_fallthru
        _
      %p248 = scmp.le.s32.totalorder 1, %s11
      %p249 = scmp.lt.s32.totalorder %s11, 5
      %p250 = pnand %p248, %p249
      %p251 = pneg %p250
      // Predicated region
      $region71: #{self_attention_forward.2} parent=5 // pred_check
        _
      $region72: #{self_attention_forward.2} parent=5 // pred_check_branch
        %253 = sbr.rel (%p250) target = $region74
      $region73: #{self_attention_forward.2} parent=5 // pred_region
        %s254 = ssub.s32 %s11, 1
        %s255 = sand.u32 %s38, 1
        %s256 = sand.u32 %s38, 1
        %s257 = smul.addr %s256, 32
        %s258 = scalar_lea.vmem [#allocation3], %s257
        // Predicated region
        $region75: #{self_attention_forward.2} parent=73 // pred_check
          %p259 = pneg %p51
        $region76: #{self_attention_forward.2} parent=73 // pred_check_branch
          %261 = sbr.rel (%p259) target = $region78
        $region77: #{self_attention_forward.2} parent=73 // pred_region
          _
        $region78: #{self_attention_forward.2} parent=73 // pred_fallthru
          _
        %s262 = sand.u32 %s38, 1
        %s263 = sand.u32 %s38, 1
        %s264 = smul.addr %s263, 32
        %s265 = scalar_lea.vmem [#allocation3], %s264
        %p266 = pneg %p51
        %p267 = pneg %p48
        %p268 = pneg %p72
        %p269 = pneg %p69
        %p270 = pneg %p93
        %p271 = pneg %p90
        %p272 = pneg %p114
        %p273 = pneg %p111
        %p274 = pneg %p135
        %p275 = pneg %p132
        %p276 = pneg %p161
        %p277 = pneg %p158
        %p278 = scmp.lt.s32.totalorder %s20, 1
        %s279 = scalar_select %p278, %s20, 1
        %s280 = smul.addr %s279, 4
        %s281 = smul.addr %s280, 8
        %s282 = scalar_lea.vmem %s5, %s281
        %p283 = scmp.lt.s32.totalorder %s20, 1
        %s284 = scalar_select %p283, %s20, 1
        %s285 = smul.addr %s284, 4
        %s286 = smul.addr %s285, 8
        %s287 = scalar_lea.vmem %s5, %s286
        %p288 = scmp.eq.s32.totalorder %s21, 0
        // Predicated region
        $region79: #{self_attention_forward.2} parent=73 // pred_check
          %p289 = pneg %p288
        $region80: #{self_attention_forward.2} parent=73 // pred_check_branch
          %291 = sbr.rel (%p289) target = $region82
        $region81: #{self_attention_forward.2} parent=73 // pred_region
          %vm292 = vcmask 64512
          %293 = vst.msk [vmem:[#allocation2] sm:$0xff] %vm292, 0.0
          %294 = vst.msk [vmem:[#allocation2 + $0x8] sm:$0xff] %vm292, 0.0
          %295 = vst.msk [vmem:[#allocation2 + $0x10] sm:$0xff] %vm292, 0.0
          %296 = vst.msk [vmem:[#allocation2 + $0x18] sm:$0xff] %vm292, 0.0
        $region82: #{self_attention_forward.2} parent=73 // pred_fallthru
          _
        %v297 = vld [vmem:[%s258] sm:$0xff]
        %v298 = vld [vmem:[%s258 + $0x8] sm:$0xff]
        %v299 = vld [vmem:[%s258 + $0x10] sm:$0xff]
        %v300 = vld [vmem:[%s258 + $0x18] sm:$0xff]
        %v301 = vld [vmem:[%s1] sm:$0xff]
        %v302 = vld [vmem:[%s1 + $0x8] sm:$0xff]
        %v303 = vld [vmem:[%s1 + $0x10] sm:$0xff]
        %v304 = vld [vmem:[%s1 + $0x18] sm:$0xff]
        %v305 = vld [vmem:[%s2] sm:$0xff]
        %v306 = vld [vmem:[%s2 + $0x8] sm:$0xff]
        %v307 = vld [vmem:[%s2 + $0x10] sm:$0xff]
        %v308 = vld [vmem:[%s2 + $0x18] sm:$0xff]
        %310 = vset.pattern.permute.xlu0 0
        %311 = vperm.xlu0 %310, %v305
        %v312 = vpop.permute.xlu0 %311
        %315 = vset.pattern.permute.xlu0 0
        %316 = vperm.xlu0 %315, %v306
        %v317 = vpop.permute.xlu0 %316
        %320 = vset.pattern.permute.xlu0 0
        %321 = vperm.xlu0 %320, %v307
        %v322 = vpop.permute.xlu0 %321
        %325 = vset.pattern.permute.xlu0 0
        %326 = vperm.xlu0 %325, %v308
        %v327 = vpop.permute.xlu0 %326
        %vm329 = vcmask 261120
        %v331 = vsel %vm329, %v301, 0
        %v334 = vsel %vm329, %v302, 0
        %v337 = vsel %vm329, %v303, 0
        %v340 = vsel %vm329, %v304, 0
        %342 = vmatpush.msra.mxu0 0.0
        %343 = vmatpush.msra.mxu0 0.0
        %344 = vmatpush.msra.mxu0 0.0
        %345 = vmatpush.msra.mxu0 0.0
        %346 = vmatpush.msra.mxu0 0.0
        %347 = vmatpush.msra.mxu0 0.0
        %348 = vmatpush.msra.mxu0 0.0
        %349 = vmatpush.msra.mxu0 0.0
        %350 = vmatpush.msra.mxu0 0.0
        %351 = vmatpush.msra.mxu0 0.0
        %352 = vmatpush.msra.mxu0 0.0
        %353 = vmatpush.msra.mxu0 0.0
        %354 = vmatpush.msra.mxu0 %v300
        %355 = vmatpush.msra.mxu0 %v299
        %356 = vmatpush.msra.mxu0 %v298
        %357 = vmatpush.msra.mxu0 %v297
        %358 = vmatmul.f32.gmra.mxu0 %v331
        %v359 = vpop.f32.mrf.mxu0
        %v360 = vadd.f32 %v312, %v359
        %361 = vmatmul.f32.gmra.mxu0 %v334
        %v362 = vpop.f32.mrf.mxu0
        %v363 = vadd.f32 %v317, %v362
        %364 = vmatmul.f32.gmra.mxu0 %v337
        %v365 = vpop.f32.mrf.mxu0
        %v366 = vadd.f32 %v322, %v365
        %367 = vmatmul.f32.gmra.mxu0 %v340
        %v368 = vpop.f32.mrf.mxu0
        %v369 = vadd.f32 %v327, %v368
        %370 = vdwg.mxu0
        %v371 = vld [vmem:[%s3] sm:$0xff]
        %v372 = vld [vmem:[%s3 + $0x8] sm:$0xff]
        %v373 = vld [vmem:[%s3 + $0x10] sm:$0xff]
        %v374 = vld [vmem:[%s3 + $0x18] sm:$0xff]
        %v375 = vld [vmem:[%s4] sm:$0xff]
        %v376 = vld [vmem:[%s4 + $0x8] sm:$0xff]
        %v377 = vld [vmem:[%s4 + $0x10] sm:$0xff]
        %v378 = vld [vmem:[%s4 + $0x18] sm:$0xff]
        %380 = vset.pattern.permute.xlu0 0
        %381 = vperm.xlu0 %380, %v375
        %v382 = vpop.permute.xlu0 %381
        %385 = vset.pattern.permute.xlu0 0
        %386 = vperm.xlu0 %385, %v376
        %v387 = vpop.permute.xlu0 %386
        %390 = vset.pattern.permute.xlu0 0
        %391 = vperm.xlu0 %390, %v377
        %v392 = vpop.permute.xlu0 %391
        %395 = vset.pattern.permute.xlu0 0
        %396 = vperm.xlu0 %395, %v378
        %v397 = vpop.permute.xlu0 %396
        %v400 = vsel %vm329, %v371, 0
        %v403 = vsel %vm329, %v372, 0
        %v406 = vsel %vm329, %v373, 0
        %v409 = vsel %vm329, %v374, 0
        %411 = vmatpush.msra.mxu0 0.0
        %412 = vmatpush.msra.mxu0 0.0
        %413 = vmatpush.msra.mxu0 0.0
        %414 = vmatpush.msra.mxu0 0.0
        %415 = vmatpush.msra.mxu0 0.0
        %416 = vmatpush.msra.mxu0 0.0
        %417 = vmatpush.msra.mxu0 0.0
        %418 = vmatpush.msra.mxu0 0.0
        %419 = vmatpush.msra.mxu0 0.0
        %420 = vmatpush.msra.mxu0 0.0
        %421 = vmatpush.msra.mxu0 0.0
        %422 = vmatpush.msra.mxu0 0.0
        %423 = vmatpush.msra.mxu0 %v300
        %424 = vmatpush.msra.mxu0 %v299
        %425 = vmatpush.msra.mxu0 %v298
        %426 = vmatpush.msra.mxu0 %v297
        %427 = vmatmul.f32.gmra.mxu0 %v400
        %v428 = vpop.f32.mrf.mxu0
        %v429 = vadd.f32 %v382, %v428
        %430 = vmatmul.f32.gmra.mxu0 %v403
        %v431 = vpop.f32.mrf.mxu0
        %v432 = vadd.f32 %v387, %v431
        %433 = vmatmul.f32.gmra.mxu0 %v406
        %v434 = vpop.f32.mrf.mxu0
        %v435 = vadd.f32 %v392, %v434
        %436 = vmatmul.f32.gmra.mxu0 %v409
        %v437 = vpop.f32.mrf.mxu0
        %v438 = vadd.f32 %v397, %v437
        %439 = vdwg.mxu0
        %v440 = vld [vmem:[#allocation2] sm:$0xff]
        %441 = vmatpush.xpose.msra.mxu0 0.0
        %442 = vmatpush.xpose.msra.mxu0 0.0
        %443 = vmatpush.xpose.msra.mxu0 0.0
        %444 = vmatpush.xpose.msra.mxu0 0.0
        %445 = vmatpush.xpose.msra.mxu0 0.0
        %446 = vmatpush.xpose.msra.mxu0 0.0
        %447 = vmatpush.xpose.msra.mxu0 0.0
        %448 = vmatpush.xpose.msra.mxu0 0.0
        %449 = vmatpush.xpose.msra.mxu0 0.0
        %450 = vmatpush.xpose.msra.mxu0 0.0
        %451 = vmatpush.xpose.msra.mxu0 0.0
        %452 = vmatpush.xpose.msra.mxu0 0.0
        %453 = vmatpush.xpose.msra.mxu0 0.0
        %454 = vmatpush.xpose.msra.mxu0 0.0
        %455 = vmatpush.xpose.msra.mxu0 0.0
        %456 = vmatpush.xpose.msra.mxu0 %v429
        %457 = vmatmul.f32.gmra.mxu0 %v360
        %v458 = vpop.f32.mrf.mxu0
        %v459 = vadd.f32 0.0, %v458
        %460 = vdwg.mxu0
        %v461 = vadd.f32 %v440, %v459
        %vm462 = vcmask 64512
        %463 = vst.msk [vmem:[#allocation2] sm:$0xff] %vm462, %v461
        %s464 = scalar_lea.vmem [#allocation2], 8
        %v465 = vld [vmem:[%s464] sm:$0xff]
        %466 = vmatpush.xpose.msra.mxu0 0.0
        %467 = vmatpush.xpose.msra.mxu0 0.0
        %468 = vmatpush.xpose.msra.mxu0 0.0
        %469 = vmatpush.xpose.msra.mxu0 0.0
        %470 = vmatpush.xpose.msra.mxu0 0.0
        %471 = vmatpush.xpose.msra.mxu0 0.0
        %472 = vmatpush.xpose.msra.mxu0 0.0
        %473 = vmatpush.xpose.msra.mxu0 0.0
        %474 = vmatpush.xpose.msra.mxu0 0.0
        %475 = vmatpush.xpose.msra.mxu0 0.0
        %476 = vmatpush.xpose.msra.mxu0 0.0
        %477 = vmatpush.xpose.msra.mxu0 0.0
        %478 = vmatpush.xpose.msra.mxu0 0.0
        %479 = vmatpush.xpose.msra.mxu0 0.0
        %480 = vmatpush.xpose.msra.mxu0 0.0
        %481 = vmatpush.xpose.msra.mxu0 %v432
        %482 = vmatmul.f32.gmra.mxu0 %v363
        %v483 = vpop.f32.mrf.mxu0
        %v484 = vadd.f32 0.0, %v483
        %485 = vdwg.mxu0
        %v486 = vadd.f32 %v465, %v484
        %487 = vst.msk [vmem:[%s464] sm:$0xff] %vm462, %v486
        %s488 = scalar_lea.vmem [#allocation2], 16
        %v489 = vld [vmem:[%s488] sm:$0xff]
        %490 = vmatpush.xpose.msra.mxu0 0.0
        %491 = vmatpush.xpose.msra.mxu0 0.0
        %492 = vmatpush.xpose.msra.mxu0 0.0
        %493 = vmatpush.xpose.msra.mxu0 0.0
        %494 = vmatpush.xpose.msra.mxu0 0.0
        %495 = vmatpush.xpose.msra.mxu0 0.0
        %496 = vmatpush.xpose.msra.mxu0 0.0
        %497 = vmatpush.xpose.msra.mxu0 0.0
        %498 = vmatpush.xpose.msra.mxu0 0.0
        %499 = vmatpush.xpose.msra.mxu0 0.0
        %500 = vmatpush.xpose.msra.mxu0 0.0
        %501 = vmatpush.xpose.msra.mxu0 0.0
        %502 = vmatpush.xpose.msra.mxu0 0.0
        %503 = vmatpush.xpose.msra.mxu0 0.0
        %504 = vmatpush.xpose.msra.mxu0 0.0
        %505 = vmatpush.xpose.msra.mxu0 %v435
        %506 = vmatmul.f32.gmra.mxu0 %v366
        %v507 = vpop.f32.mrf.mxu0
        %v508 = vadd.f32 0.0, %v507
        %509 = vdwg.mxu0
        %v510 = vadd.f32 %v489, %v508
        %511 = vst.msk [vmem:[%s488] sm:$0xff] %vm462, %v510
        %s512 = scalar_lea.vmem [#allocation2], 24
        %v513 = vld [vmem:[%s512] sm:$0xff]
        %514 = vmatpush.xpose.msra.mxu0 0.0
        %515 = vmatpush.xpose.msra.mxu0 0.0
        %516 = vmatpush.xpose.msra.mxu0 0.0
        %517 = vmatpush.xpose.msra.mxu0 0.0
        %518 = vmatpush.xpose.msra.mxu0 0.0
        %519 = vmatpush.xpose.msra.mxu0 0.0
        %520 = vmatpush.xpose.msra.mxu0 0.0
        %521 = vmatpush.xpose.msra.mxu0 0.0
        %522 = vmatpush.xpose.msra.mxu0 0.0
        %523 = vmatpush.xpose.msra.mxu0 0.0
        %524 = vmatpush.xpose.msra.mxu0 0.0
        %525 = vmatpush.xpose.msra.mxu0 0.0
        %526 = vmatpush.xpose.msra.mxu0 0.0
        %527 = vmatpush.xpose.msra.mxu0 0.0
        %528 = vmatpush.xpose.msra.mxu0 0.0
        %529 = vmatpush.xpose.msra.mxu0 %v438
        %530 = vmatmul.f32.gmra.mxu0 %v369
        %v531 = vpop.f32.mrf.mxu0
        %v532 = vadd.f32 0.0, %v531
        %533 = vdwg.mxu0
        %v534 = vadd.f32 %v513, %v532
        %535 = vst.msk [vmem:[%s512] sm:$0xff] %vm462, %v534
        %p536 = scmp.eq.s32.totalorder %s21, 1
        // Predicated region
        $region83: #{self_attention_forward.2} parent=73 // pred_check
          %p537 = pneg %p536
        $region84: #{self_attention_forward.2} parent=73 // pred_check_branch
          %539 = sbr.rel (%p537) target = $region86
        $region85: #{self_attention_forward.2} parent=73 // pred_region
          %v540 = vld [vmem:[#allocation2] sm:$0xff]
          %v541 = vmul.f32 %v540, 0.35355338
          %v542 = vsel %vm462, %v541, -inf
          %543 = vmax.xlane.f32.xlu0 %v542
          %v544 = vpop.xlane.xlu0 %543
          %v545 = vsub.f32 %v541, %v544
          %v546 = vmul.f32 %v545, 1.442695
          %v547 = vpow.pop %v546
          %v548 = vsel %vm462, %v547, 0.0
          %549 = vadd.xlane.f32.xlu0 %v548
          %v550 = vpop.xlane.xlu0 %549
          %v551 = vrcp.pop %v550
          %v552 = vmul.f32 %v550, %v551
          %v553 = vsub.f32 1.0, %v552
          %v554 = vmul.f32 %v551, %v553
          %v555 = vadd.f32 %v551, %v554
          %vm556 = vweird.f32 %v550
          %vm557 = vweird.f32 %v551
          %vm558 = vmor %vm556, %vm557
          %v559 = vsel %vm558, %v551, %v555
          %v560 = vand.u32 2147483647, %v550
          %vm561 = vcmp.eq.f32.partialorder %v560, 8.507059e+37
          %v562 = vand.u32 %v550, 2147483648
          %v563 = vor.u32 1.1754944e-38, %v562
          %v564 = vsel %vm561, %v563, %v559
          %v565 = vmul.f32 %v547, %v564
          %566 = vst.msk [vmem:[%s287] sm:$0xff] %vm462, %v565
          %v567 = vld [vmem:[%s464] sm:$0xff]
          %v568 = vmul.f32 %v567, 0.35355338
          %v569 = vsel %vm462, %v568, -inf
          %570 = vmax.xlane.f32.xlu0 %v569
          %v571 = vpop.xlane.xlu0 %570
          %v572 = vsub.f32 %v568, %v571
          %v573 = vmul.f32 %v572, 1.442695
          %v574 = vpow.pop %v573
          %v575 = vsel %vm462, %v574, 0.0
          %576 = vadd.xlane.f32.xlu0 %v575
          %v577 = vpop.xlane.xlu0 %576
          %v578 = vrcp.pop %v577
          %v579 = vmul.f32 %v577, %v578
          %v580 = vsub.f32 1.0, %v579
          %v581 = vmul.f32 %v578, %v580
          %v582 = vadd.f32 %v578, %v581
          %vm583 = vweird.f32 %v577
          %vm584 = vweird.f32 %v578
          %vm585 = vmor %vm583, %vm584
          %v586 = vsel %vm585, %v578, %v582
          %v587 = vand.u32 2147483647, %v577
          %vm588 = vcmp.eq.f32.partialorder %v587, 8.507059e+37
          %v589 = vand.u32 %v577, 2147483648
          %v590 = vor.u32 1.1754944e-38, %v589
          %v591 = vsel %vm588, %v590, %v586
          %v592 = vmul.f32 %v574, %v591
          %s593 = scalar_lea.vmem %s287, 8
          %594 = vst.msk [vmem:[%s593] sm:$0xff] %vm462, %v592
          %v595 = vld [vmem:[%s488] sm:$0xff]
          %v596 = vmul.f32 %v595, 0.35355338
          %v597 = vsel %vm462, %v596, -inf
          %598 = vmax.xlane.f32.xlu0 %v597
          %v599 = vpop.xlane.xlu0 %598
          %v600 = vsub.f32 %v596, %v599
          %v601 = vmul.f32 %v600, 1.442695
          %v602 = vpow.pop %v601
          %v603 = vsel %vm462, %v602, 0.0
          %604 = vadd.xlane.f32.xlu0 %v603
          %v605 = vpop.xlane.xlu0 %604
          %v606 = vrcp.pop %v605
          %v607 = vmul.f32 %v605, %v606
          %v608 = vsub.f32 1.0, %v607
          %v609 = vmul.f32 %v606, %v608
          %v610 = vadd.f32 %v606, %v609
          %vm611 = vweird.f32 %v605
          %vm612 = vweird.f32 %v606
          %vm613 = vmor %vm611, %vm612
          %v614 = vsel %vm613, %v606, %v610
          %v615 = vand.u32 2147483647, %v605
          %vm616 = vcmp.eq.f32.partialorder %v615, 8.507059e+37
          %v617 = vand.u32 %v605, 2147483648
          %v618 = vor.u32 1.1754944e-38, %v617
          %v619 = vsel %vm616, %v618, %v614
          %v620 = vmul.f32 %v602, %v619
          %s621 = scalar_lea.vmem %s287, 16
          %622 = vst.msk [vmem:[%s621] sm:$0xff] %vm462, %v620
          %v623 = vld [vmem:[%s512] sm:$0xff]
          %v624 = vmul.f32 %v623, 0.35355338
          %v625 = vsel %vm462, %v624, -inf
          %626 = vmax.xlane.f32.xlu0 %v625
          %v627 = vpop.xlane.xlu0 %626
          %v628 = vsub.f32 %v624, %v627
          %v629 = vmul.f32 %v628, 1.442695
          %v630 = vpow.pop %v629
          %v631 = vsel %vm462, %v630, 0.0
          %632 = vadd.xlane.f32.xlu0 %v631
          %v633 = vpop.xlane.xlu0 %632
          %v634 = vrcp.pop %v633
          %v635 = vmul.f32 %v633, %v634
          %v636 = vsub.f32 1.0, %v635
          %v637 = vmul.f32 %v634, %v636
          %v638 = vadd.f32 %v634, %v637
          %vm639 = vweird.f32 %v633
          %vm640 = vweird.f32 %v634
          %vm641 = vmor %vm639, %vm640
          %v642 = vsel %vm641, %v634, %v638
          %v643 = vand.u32 2147483647, %v633
          %vm644 = vcmp.eq.f32.partialorder %v643, 8.507059e+37
          %v645 = vand.u32 %v633, 2147483648
          %v646 = vor.u32 1.1754944e-38, %v645
          %v647 = vsel %vm644, %v646, %v642
          %v648 = vmul.f32 %v630, %v647
          %s649 = scalar_lea.vmem %s287, 24
          %650 = vst.msk [vmem:[%s649] sm:$0xff] %vm462, %v648
        $region86: #{self_attention_forward.2} parent=73 // pred_fallthru
          _
        %p651 = scmp.lt.s32.totalorder %s20, 1
        %s652 = scalar_select %p651, %s20, 1
        %s653 = smul.addr %s652, 4
        %s654 = smul.addr %s653, 8
        %s655 = scalar_lea.vmem %s5, %s654
        // Predicated region
        $region87: #{self_attention_forward.2} parent=73 // pred_check
          %p656 = pneg %p158
        $region88: #{self_attention_forward.2} parent=73 // pred_check_branch
          %658 = sbr.rel (%p656) target = $region90
        $region89: #{self_attention_forward.2} parent=73 // pred_region
          _
        $region90: #{self_attention_forward.2} parent=73 // pred_fallthru
          _
      $region74: #{self_attention_forward.2} parent=5 // pred_fallthru
        _
      %p659 = scmp.le.s32.totalorder 2, %s11
      // Predicated region
      $region91: #{self_attention_forward.2} parent=5 // pred_check
        %p660 = pneg %p659
      $region92: #{self_attention_forward.2} parent=5 // pred_check_branch
        %662 = sbr.rel (%p660) target = $region94
      $region93: #{self_attention_forward.2} parent=5 // pred_region
        %s663 = ssub.s32 %s11, 2
        // Predicated region
        $region95: #{self_attention_forward.2} parent=93 // pred_check
          %p664 = pneg %p164
        $region96: #{self_attention_forward.2} parent=93 // pred_check_branch
          %666 = sbr.rel (%p664) target = $region98
        $region97: #{self_attention_forward.2} parent=93 // pred_region
          %p667 = scmp.lt.s32.totalorder %s22, 1
          %s668 = scalar_select %p667, %s22, 1
          %s669 = smul.addr %s668, 4
          %s670 = smul.addr %s669, 8
          %s671 = scalar_lea.vmem %s5, %s670
        $region98: #{self_attention_forward.2} parent=93 // pred_fallthru
          _
      $region94: #{self_attention_forward.2} parent=5 // pred_fallthru
        _
    $region6: #{self_attention_forward.2} parent=1 // loop_footer
      %s15 = sadd.s32 1, %s11
    $region7: #{self_attention_forward.2} parent=1 // loop_footer_branch
      %10 = sbr.rel target = $region3
    $region8: #{self_attention_forward.2} parent=1 // loop_exit
      _

</llo_original>
